<compile_context>
chip_gen: v5e
topology: v5e:2x2
jax: 0.10.0
libtpu: 0.0.40
codegen_flags: <defaults>
</compile_context>

<pallas_src>
import functools

import numpy as np
import jax
import jax.numpy as jnp
from jax.experimental import pallas as pl
from jax.experimental.pallas import tpu as pltpu

_NEG_BIG = 1e30
_LANE_TILE = 128


def _vmem_limit_bytes():
    """Per-generation scoped-VMEM limit (v7x: 64 MiB phys, v5e/v6e: 128 MiB)."""
    try:
        cap = int(getattr(pltpu.get_tpu_info(), "vmem_capacity_bytes",
                          64 * 1024 * 1024))
    except Exception:
        cap = 64 * 1024 * 1024
    return int(min(cap * 3 // 4, 96 * 1024 * 1024))


def _pick_tile(n_pad, hf, d_out, heads, vmem_limit):
    """Largest destination tile (multiple of 128 dividing n_pad) whose streams
    plus resident operands fit comfortably inside the scoped VMEM budget."""
    budget = int(vmem_limit * 0.5)
    # resident operands (double-buffered by default): bf16 h^T, f32 a_src, bias
    resident = 2 * (hf * n_pad * 2 + n_pad * 128 * 4 + d_out * 128 * 4)
    for t in (512, 384, 256, 128):
        if n_pad % t:
            continue
        streamed = 2 * t * (n_pad * 1 + heads * 4 + 2 * d_out * 4)  # adj i8, a_dst, out
        if resident + streamed <= budget:
            return t
    return _LANE_TILE


# ---------------------------------------------------------------------------
# Pallas kernel: one GATConv layer, grid = destination-node tiles (parallel)
# ---------------------------------------------------------------------------
def _gat_conv_kernel(hT_ref, asrc_ref, adstT_ref, b_ref, adjT_ref, out_ref,
                     *, heads, f_out, concat, neg_slope, out_mode):
    # int8 0/1 mask -> additive bias 0 / -1e30, computed once per tile and
    # shared across heads.
    adj_bias = (adjT_ref[...].astype(jnp.float32) - 1.0) * _NEG_BIG   # (N_pad, T)
    a_dst_all = adstT_ref[...]                                        # (H, T)

    acc = None
    for h in range(heads):                          # heads is small and static
        a_src_col = asrc_ref[:, h:h + 1]            # (N_pad, 1)
        e = a_src_col + a_dst_all[h:h + 1, :]       # (N_pad, T) broadcast sum
        e = jnp.where(e > 0, e, neg_slope * e)      # LeakyReLU(0.2)
        e = e + adj_bias                            # mask non-edges
        m = jnp.max(e, axis=0, keepdims=True)       # (1, T)
        p = jnp.exp(e - m)                          # unnormalized softmax
        s = jnp.sum(p, axis=0, keepdims=True)       # (1, T), >= 1 (self-loops)
        # Aggregate with unnormalized weights on the MXU (bf16 operands,
        # f32 accumulation), then normalize the small (F, T) result.
        o_h = jnp.dot(hT_ref[h], p.astype(jnp.bfloat16),
                      preferred_element_type=jnp.float32)             # (F, T)
        o_h = o_h * pl.reciprocal(s, approx=True)                     # EUP slot
        if concat:
            o_h = o_h + b_ref[h * f_out:(h + 1) * f_out, :]
            if out_mode == "elu":
                o_h = jnp.where(o_h > 0, o_h,
                                jnp.exp(jnp.minimum(o_h, 0.0)) - 1.0)
            out_ref[h * f_out:(h + 1) * f_out, :] = o_h               # head-slice store
        else:
            acc = o_h if acc is None else acc + o_h

    if not concat:                                  # mean over heads + bias
        out = acc * (1.0 / heads) + b_ref[...]
        if out_mode == "log_softmax":               # classes on sublane axis
            m2 = jnp.max(out, axis=0, keepdims=True)
            lse = m2 + jnp.log(jnp.sum(jnp.exp(out - m2), axis=0, keepdims=True))
            out = out - lse
        out_ref[...] = out


def gat_conv_layer(xT, W, att_src, att_dst, bias, adjT_i8, *, heads, f_out,
                   concat, out_mode, vmem_limit, tile=None):
    """One GATConv layer. Feature-major in (d_in, N_pad) -> out (d_out, N_pad)."""
    d_in, n_pad = xT.shape
    hf = heads * f_out
    d_out = hf if concat else f_out
    assert n_pad % _LANE_TILE == 0

    # -------- hoisted whole-graph projections (plain XLA, runs once) --------
    W = W.astype(jnp.float32)
    hT = jnp.dot(W, xT.astype(jnp.float32),
                 preferred_element_type=jnp.float32)                  # (hf, N_pad)
    hT3 = hT.reshape(heads, f_out, n_pad)
    a_srcT = jnp.einsum("hf,hfn->hn", att_src.astype(jnp.float32), hT3)  # (H, N_pad)
    a_dstT = jnp.einsum("hf,hfn->hn", att_dst.astype(jnp.float32), hT3)  # (H, N_pad)
    a_src = a_srcT.T                                                  # (N_pad, H)
    hT_bf16 = hT3.astype(jnp.bfloat16)                                # bf16 MXU operand
    b_col = bias.astype(jnp.float32).reshape(d_out, 1)

    if tile is None:
        tile = _pick_tile(n_pad, hf, d_out, heads, vmem_limit)

    kernel = functools.partial(_gat_conv_kernel, heads=heads, f_out=f_out,
                               concat=concat, neg_slope=0.2, out_mode=out_mode)
    return pl.pallas_call(
        kernel,
        out_shape=jax.ShapeDtypeStruct((d_out, n_pad), jnp.float32),
        grid=(n_pad // tile,),
        in_specs=[
            # Resident operands (constant index maps).  A pl.Buffered(1)
            # pipeline_mode hint would single-buffer them if VMEM got tight.
            pl.BlockSpec((heads, f_out, n_pad), lambda i: (0, 0, 0)),  # h^T bf16
            pl.BlockSpec((n_pad, heads), lambda i: (0, 0)),            # a_src cols
            pl.BlockSpec((heads, tile), lambda i: (0, i)),             # a_dst rows, tile
            pl.BlockSpec((d_out, 1), lambda i: (0, 0)),                # bias column
            pl.BlockSpec((n_pad, tile), lambda i: (0, i)),             # adjacency int8
        ],
        out_specs=pl.BlockSpec((d_out, tile), lambda i: (0, i)),
        compiler_params=pltpu.CompilerParams(
            dimension_semantics=("parallel",),      # no cross-tile dependency
            vmem_limit_bytes=vmem_limit),
    )(hT_bf16, a_src, a_dstT, b_col, adjT_i8)


# ---------------------------------------------------------------------------
# glue: padding, adjacency mask, full 2-layer GAT forward
# ---------------------------------------------------------------------------
def _build_adjT_mask(edge_src, edge_dst, n_pad):
    # TODO(synk): dense O(N^2) host mask; for large graphs switch to a
    # scalar-prefetched CSR/edge formulation.
    m = np.zeros((n_pad, n_pad), np.int8)
    np.fill_diagonal(m, 1)                                 # add_self_loops=True
    m[np.asarray(edge_src), np.asarray(edge_dst)] = 1      # adjT[src, dst] = 1
    return jnp.asarray(m)


def gat_forward(x, edge_src, edge_dst, params, *, heads, dim_hidden, dim_out):
    (W1, a1s, a1d, b1, W2, a2s, a2d, b2) = params
    n, d_in = x.shape
    n_pad = -(-n // _LANE_TILE) * _LANE_TILE
    # feature-major once; layers hand off feature-major with no transposes
    xT = jnp.zeros((d_in, n_pad), jnp.float32).at[:, :n].set(
        jnp.asarray(x, jnp.float32).T)
    adjT = _build_adjT_mask(edge_src, edge_dst, n_pad)
    vmem = _vmem_limit_bytes()

    # TODO(synk): nn.Dropout(p=0.0 default) is an identity and is omitted.
    h1T = gat_conv_layer(xT, W1, a1s, a1d, b1, adjT, heads=heads,
                         f_out=dim_hidden, concat=True, out_mode="elu",
                         vmem_limit=vmem)
    outT = gat_conv_layer(h1T, W2, a2s, a2d, b2, adjT, heads=heads,
                          f_out=dim_out, concat=False, out_mode="log_softmax",
                          vmem_limit=vmem)
    return outT.T[:n]                                      # (N, dim_out)


# ---------------------------------------------------------------------------
# pure-JAX reference (PyG GATConv with segment ops) for validation
# ---------------------------------------------------------------------------
def _gat_conv_ref(x, W, att_src, att_dst, bias, src, dst, num_nodes, heads,
                  f_out, concat, neg_slope=0.2):
    h = (x @ W.T).reshape(num_nodes, heads, f_out)
    a_src = jnp.sum(h * att_src[None], axis=-1)
    a_dst = jnp.sum(h * att_dst[None], axis=-1)
    e = a_src[src] + a_dst[dst]
    e = jnp.where(e > 0, e, neg_slope * e)
    e_max = jax.ops.segment_max(e, dst, num_segments=num_nodes)
    p = jnp.exp(e - e_max[dst])
    denom = jax.ops.segment_sum(p, dst, num_segments=num_nodes)
    alpha = p / denom[dst]
    out = jax.ops.segment_sum(alpha[:, :, None] * h[src], dst,
                              num_segments=num_nodes)
    out = out.reshape(num_nodes, heads * f_out) if concat else out.mean(axis=1)
    return out + bias


def gat_reference(x, edge_src, edge_dst, params, *, heads, dim_hidden, dim_out):
    (W1, a1s, a1d, b1, W2, a2s, a2d, b2) = params
    n = x.shape[0]
    loop = jnp.arange(n, dtype=edge_src.dtype)
    src = jnp.concatenate([edge_src, loop])                # add self-loops
    dst = jnp.concatenate([edge_dst, loop])
    h1 = _gat_conv_ref(x, W1, a1s, a1d, b1, src, dst, n, heads, dim_hidden, True)
    h1 = jax.nn.elu(h1)
    h2 = _gat_conv_ref(h1, W2, a2s, a2d, b2, src, dst, n, heads, dim_out, False)
    return jax.nn.log_softmax(h2, axis=-1)


# ---------------------------------------------------------------------------
if __name__ == "__main__":
    N, DIM_IN, DIM_HIDDEN, DIM_OUT, HEADS = 48, 16, 16, 8, 4

    # deterministic small graph: bidirectional ring + chords (no self-loops/dups)
    ring = np.arange(N)
    src_np = np.concatenate([ring, (ring + 1) % N, np.arange(0, N, 3)])
    dst_np = np.concatenate([(ring + 1) % N, ring, (np.arange(0, N, 3) + 7) % N])
    keys = np.unique(src_np * N + dst_np)
    src_np = (keys // N).astype(np.int32)
    dst_np = (keys % N).astype(np.int32)

    k = jax.random.split(jax.random.PRNGKey(0), 9)
    x = jax.random.normal(k[0], (N, DIM_IN), jnp.float32)
    W1 = jax.random.normal(k[1], (HEADS * DIM_HIDDEN, DIM_IN), jnp.float32) / np.sqrt(DIM_IN)
    a1s = jax.random.normal(k[2], (HEADS, DIM_HIDDEN), jnp.float32) * 0.3
    a1d = jax.random.normal(k[3], (HEADS, DIM_HIDDEN), jnp.float32) * 0.3
    b1 = jax.random.normal(k[4], (HEADS * DIM_HIDDEN,), jnp.float32) * 0.1
    W2 = jax.random.normal(k[5], (HEADS * DIM_OUT, HEADS * DIM_HIDDEN), jnp.float32) / np.sqrt(HEADS * DIM_HIDDEN)
    a2s = jax.random.normal(k[6], (HEADS, DIM_OUT), jnp.float32) * 0.3
    a2d = jax.random.normal(k[7], (HEADS, DIM_OUT), jnp.float32) * 0.3
    b2 = jax.random.normal(k[8], (DIM_OUT,), jnp.float32) * 0.1
    params = (W1, a1s, a1d, b1, W2, a2s, a2d, b2)

    out = gat_forward(x, src_np, dst_np, params, heads=HEADS,
                      dim_hidden=DIM_HIDDEN, dim_out=DIM_OUT)
    out = jax.block_until_ready(out)

    ref = gat_reference(x, jnp.asarray(src_np), jnp.asarray(dst_np), params,
                        heads=HEADS, dim_hidden=DIM_HIDDEN, dim_out=DIM_OUT)
    # Tolerance loosened vs the f32-only version: h^T and p are bf16 MXU
    # operands (f32 accumulation) and the softmax denominator uses the
    # approximate EUP reciprocal.
    np.testing.assert_allclose(np.asarray(out), np.asarray(ref),
                               rtol=2e-2, atol=5e-2)
    print("KERNEL_OK")
</pallas_src>

<mosaic_0001>
module attributes {stable_mosaic.version = 11 : i64} {
  func.func @_gat_conv_kernel(%arg0: i32, %arg1: memref<4x16x128xbf16, #tpu.memory_space<vmem>>, %arg2: memref<128x4xf32, #tpu.memory_space<vmem>>, %arg3: memref<4x128xf32, #tpu.memory_space<vmem>>, %arg4: memref<64x1xf32, #tpu.memory_space<vmem>>, %arg5: memref<128x128xi8, #tpu.memory_space<vmem>>, %arg6: memref<64x128xf32, #tpu.memory_space<vmem>>) attributes {dimension_semantics = [#tpu.dimension_semantics<parallel>], iteration_bounds = array<i64: 1>, scalar_prefetch = 0 : i64, scratch_operands = 0 : i64, tpu.core_type = #tpu.core_type<tc>, window_params = [{pipeline_mode = #tpu.pipeline_mode<synchronous>, transform_indices = @transform_0, window_bounds = array<i64: 4, 16, 128>}, {pipeline_mode = #tpu.pipeline_mode<synchronous>, transform_indices = @transform_1, window_bounds = array<i64: 128, 4>}, {transform_indices = @transform_2, window_bounds = array<i64: 4, 128>}, {pipeline_mode = #tpu.pipeline_mode<synchronous>, transform_indices = @transform_3, window_bounds = array<i64: 64, 1>}, {transform_indices = @transform_4, window_bounds = array<i64: 128, 128>}, {transform_indices = @transform_5, window_bounds = array<i64: 64, 128>}]} {
    %c0 = arith.constant 0 : index
    %c0_0 = arith.constant 0 : index
    %0 = vector.load %arg5[%c0, %c0_0] : memref<128x128xi8, #tpu.memory_space<vmem>>, vector<128x128xi8>
    %1 = arith.sitofp %0 : vector<128x128xi8> to vector<128x128xf32>
    %cst = arith.constant 1.000000e+00 : f32
    %2 = vector.broadcast %cst : f32 to vector<128x128xf32>
    %3 = arith.subf %1, %2 : vector<128x128xf32>
    %cst_1 = arith.constant 1.000000e+30 : f32
    %4 = vector.broadcast %cst_1 : f32 to vector<128x128xf32>
    %5 = arith.mulf %3, %4 : vector<128x128xf32>
    %c0_2 = arith.constant 0 : index
    %c0_3 = arith.constant 0 : index
    %6 = vector.load %arg3[%c0_2, %c0_3] : memref<4x128xf32, #tpu.memory_space<vmem>>, vector<4x128xf32>
    %c0_4 = arith.constant 0 : index
    %c0_5 = arith.constant 0 : index
    %7 = vector.load %arg2[%c0_4, %c0_5] : memref<128x4xf32, #tpu.memory_space<vmem>>, vector<128x1xf32>
    %8 = vector.extract_strided_slice %6 {offsets = [0, 0], sizes = [1, 128], strides = [1, 1]} : vector<4x128xf32> to vector<1x128xf32>
    %9 = vector.broadcast %7 : vector<128x1xf32> to vector<128x128xf32>
    %10 = vector.broadcast %8 : vector<1x128xf32> to vector<128x128xf32>
    %11 = arith.addf %9, %10 : vector<128x128xf32>
    %cst_6 = arith.constant 0.000000e+00 : f32
    %12 = vector.broadcast %cst_6 : f32 to vector<128x128xf32>
    %13 = arith.cmpf ogt, %11, %12 : vector<128x128xf32>
    %cst_7 = arith.constant 2.000000e-01 : f32
    %14 = vector.broadcast %cst_7 : f32 to vector<128x128xf32>
    %15 = arith.mulf %14, %11 : vector<128x128xf32>
    %16 = arith.select %13, %11, %15 : vector<128x128xi1>, vector<128x128xf32>
    %17 = arith.addf %16, %5 : vector<128x128xf32>
    %cst_8 = arith.constant dense<0xFF800000> : vector<128xf32>
    %18 = vector.multi_reduction <maximumf>, %17, %cst_8 [0] : vector<128x128xf32> to vector<128xf32>
    %19 = vector.shape_cast %18 : vector<128xf32> to vector<1x128xf32>
    %20 = vector.broadcast %19 : vector<1x128xf32> to vector<128x128xf32>
    %21 = arith.subf %17, %20 : vector<128x128xf32>
    %22 = math.exp %21 : vector<128x128xf32>
    %cst_9 = arith.constant dense<0.000000e+00> : vector<128xf32>
    %23 = vector.multi_reduction <add>, %22, %cst_9 [0] : vector<128x128xf32> to vector<128xf32>
    %24 = vector.shape_cast %23 : vector<128xf32> to vector<1x128xf32>
    %c0_10 = arith.constant 0 : index
    %c0_11 = arith.constant 0 : index
    %c0_12 = arith.constant 0 : index
    %25 = vector.load %arg1[%c0_10, %c0_11, %c0_12] : memref<4x16x128xbf16, #tpu.memory_space<vmem>>, vector<1x16x128xbf16>
    %26 = vector.shape_cast %25 : vector<1x16x128xbf16> to vector<16x128xbf16>
    %27 = arith.truncf %22 : vector<128x128xf32> to vector<128x128xbf16>
    %cst_13 = arith.constant dense<0.000000e+00> : vector<16x128xf32>
    %28 = tpu.matmul %26, %27, %cst_13 {dimension_numbers = #tpu.dot_dimension_numbers<[1], [0], [0], [1], [0, 0, 1, 1], [], []>} : vector<16x128xbf16>, vector<128x128xbf16>, vector<16x128xf32> -> vector<16x128xf32>
    %29 = tpu.reciprocal %24 {approx = true} : vector<1x128xf32> -> vector<1x128xf32>
    %30 = vector.broadcast %29 : vector<1x128xf32> to vector<16x128xf32>
    %31 = arith.mulf %28, %30 : vector<16x128xf32>
    %c0_14 = arith.constant 0 : index
    %c0_15 = arith.constant 0 : index
    %32 = vector.load %arg4[%c0_14, %c0_15] : memref<64x1xf32, #tpu.memory_space<vmem>>, vector<16x1xf32>
    %33 = vector.broadcast %32 : vector<16x1xf32> to vector<16x128xf32>
    %34 = arith.addf %31, %33 : vector<16x128xf32>
    %cst_16 = arith.constant 0.000000e+00 : f32
    %35 = vector.broadcast %cst_16 : f32 to vector<16x128xf32>
    %36 = arith.cmpf ogt, %34, %35 : vector<16x128xf32>
    %cst_17 = arith.constant 0.000000e+00 : f32
    %37 = vector.broadcast %cst_17 : f32 to vector<16x128xf32>
    %38 = arith.minimumf %34, %37 : vector<16x128xf32>
    %39 = math.exp %38 : vector<16x128xf32>
    %cst_18 = arith.constant 1.000000e+00 : f32
    %40 = vector.broadcast %cst_18 : f32 to vector<16x128xf32>
    %41 = arith.subf %39, %40 : vector<16x128xf32>
    %42 = arith.select %36, %34, %41 : vector<16x128xi1>, vector<16x128xf32>
    %c0_19 = arith.constant 0 : index
    %c0_20 = arith.constant 0 : index
    %43 = vector.load %arg6[%c0_19, %c0_20] : memref<64x128xf32, #tpu.memory_space<vmem>>, vector<16x128xf32>
    tpu.vector_store %arg6[%c0_19, %c0_20], %42 {strides = array<i32>} : memref<64x128xf32, #tpu.memory_space<vmem>>, vector<16x128xf32>,
    %c0_21 = arith.constant 0 : index
    %c1 = arith.constant 1 : index
    %44 = vector.load %arg2[%c0_21, %c1] : memref<128x4xf32, #tpu.memory_space<vmem>>, vector<128x1xf32>
    %45 = vector.extract_strided_slice %6 {offsets = [1, 0], sizes = [1, 128], strides = [1, 1]} : vector<4x128xf32> to vector<1x128xf32>
    %46 = vector.broadcast %44 : vector<128x1xf32> to vector<128x128xf32>
    %47 = vector.broadcast %45 : vector<1x128xf32> to vector<128x128xf32>
    %48 = arith.addf %46, %47 : vector<128x128xf32>
    %cst_22 = arith.constant 0.000000e+00 : f32
    %49 = vector.broadcast %cst_22 : f32 to vector<128x128xf32>
    %50 = arith.cmpf ogt, %48, %49 : vector<128x128xf32>
    %cst_23 = arith.constant 2.000000e-01 : f32
    %51 = vector.broadcast %cst_23 : f32 to vector<128x128xf32>
    %52 = arith.mulf %51, %48 : vector<128x128xf32>
    %53 = arith.select %50, %48, %52 : vector<128x128xi1>, vector<128x128xf32>
    %54 = arith.addf %53, %5 : vector<128x128xf32>
    %cst_24 = arith.constant dense<0xFF800000> : vector<128xf32>
    %55 = vector.multi_reduction <maximumf>, %54, %cst_24 [0] : vector<128x128xf32> to vector<128xf32>
    %56 = vector.shape_cast %55 : vector<128xf32> to vector<1x128xf32>
    %57 = vector.broadcast %56 : vector<1x128xf32> to vector<128x128xf32>
    %58 = arith.subf %54, %57 : vector<128x128xf32>
    %59 = math.exp %58 : vector<128x128xf32>
    %cst_25 = arith.constant dense<0.000000e+00> : vector<128xf32>
    %60 = vector.multi_reduction <add>, %59, %cst_25 [0] : vector<128x128xf32> to vector<128xf32>
    %61 = vector.shape_cast %60 : vector<128xf32> to vector<1x128xf32>
    %c1_26 = arith.constant 1 : index
    %c0_27 = arith.constant 0 : index
    %c0_28 = arith.constant 0 : index
    %62 = vector.load %arg1[%c1_26, %c0_27, %c0_28] : memref<4x16x128xbf16, #tpu.memory_space<vmem>>, vector<1x16x128xbf16>
    %63 = vector.shape_cast %62 : vector<1x16x128xbf16> to vector<16x128xbf16>
    %64 = arith.truncf %59 : vector<128x128xf32> to vector<128x128xbf16>
    %cst_29 = arith.constant dense<0.000000e+00> : vector<16x128xf32>
    %65 = tpu.matmul %63, %64, %cst_29 {dimension_numbers = #tpu.dot_dimension_numbers<[1], [0], [0], [1], [0, 0, 1, 1], [], []>} : vector<16x128xbf16>, vector<128x128xbf16>, vector<16x128xf32> -> vector<16x128xf32>
    %66 = tpu.reciprocal %61 {approx = true} : vector<1x128xf32> -> vector<1x128xf32>
    %67 = vector.broadcast %66 : vector<1x128xf32> to vector<16x128xf32>
    %68 = arith.mulf %65, %67 : vector<16x128xf32>
    %c16 = arith.constant 16 : index
    %c0_30 = arith.constant 0 : index
    %69 = vector.load %arg4[%c16, %c0_30] : memref<64x1xf32, #tpu.memory_space<vmem>>, vector<16x1xf32>
    %70 = vector.broadcast %69 : vector<16x1xf32> to vector<16x128xf32>
    %71 = arith.addf %68, %70 : vector<16x128xf32>
    %cst_31 = arith.constant 0.000000e+00 : f32
    %72 = vector.broadcast %cst_31 : f32 to vector<16x128xf32>
    %73 = arith.cmpf ogt, %71, %72 : vector<16x128xf32>
    %cst_32 = arith.constant 0.000000e+00 : f32
    %74 = vector.broadcast %cst_32 : f32 to vector<16x128xf32>
    %75 = arith.minimumf %71, %74 : vector<16x128xf32>
    %76 = math.exp %75 : vector<16x128xf32>
    %cst_33 = arith.constant 1.000000e+00 : f32
    %77 = vector.broadcast %cst_33 : f32 to vector<16x128xf32>
    %78 = arith.subf %76, %77 : vector<16x128xf32>
    %79 = arith.select %73, %71, %78 : vector<16x128xi1>, vector<16x128xf32>
    %c16_34 = arith.constant 16 : index
    %c0_35 = arith.constant 0 : index
    %80 = vector.load %arg6[%c16_34, %c0_35] : memref<64x128xf32, #tpu.memory_space<vmem>>, vector<16x128xf32>
    tpu.vector_store %arg6[%c16_34, %c0_35], %79 {strides = array<i32>} : memref<64x128xf32, #tpu.memory_space<vmem>>, vector<16x128xf32>,
    %c0_36 = arith.constant 0 : index
    %c2 = arith.constant 2 : index
    %81 = vector.load %arg2[%c0_36, %c2] : memref<128x4xf32, #tpu.memory_space<vmem>>, vector<128x1xf32>
    %82 = vector.extract_strided_slice %6 {offsets = [2, 0], sizes = [1, 128], strides = [1, 1]} : vector<4x128xf32> to vector<1x128xf32>
    %83 = vector.broadcast %81 : vector<128x1xf32> to vector<128x128xf32>
    %84 = vector.broadcast %82 : vector<1x128xf32> to vector<128x128xf32>
    %85 = arith.addf %83, %84 : vector<128x128xf32>
    %cst_37 = arith.constant 0.000000e+00 : f32
    %86 = vector.broadcast %cst_37 : f32 to vector<128x128xf32>
    %87 = arith.cmpf ogt, %85, %86 : vector<128x128xf32>
    %cst_38 = arith.constant 2.000000e-01 : f32
    %88 = vector.broadcast %cst_38 : f32 to vector<128x128xf32>
    %89 = arith.mulf %88, %85 : vector<128x128xf32>
    %90 = arith.select %87, %85, %89 : vector<128x128xi1>, vector<128x128xf32>
    %91 = arith.addf %90, %5 : vector<128x128xf32>
    %cst_39 = arith.constant dense<0xFF800000> : vector<128xf32>
    %92 = vector.multi_reduction <maximumf>, %91, %cst_39 [0] : vector<128x128xf32> to vector<128xf32>
    %93 = vector.shape_cast %92 : vector<128xf32> to vector<1x128xf32>
    %94 = vector.broadcast %93 : vector<1x128xf32> to vector<128x128xf32>
    %95 = arith.subf %91, %94 : vector<128x128xf32>
    %96 = math.exp %95 : vector<128x128xf32>
    %cst_40 = arith.constant dense<0.000000e+00> : vector<128xf32>
    %97 = vector.multi_reduction <add>, %96, %cst_40 [0] : vector<128x128xf32> to vector<128xf32>
    %98 = vector.shape_cast %97 : vector<128xf32> to vector<1x128xf32>
    %c2_41 = arith.constant 2 : index
    %c0_42 = arith.constant 0 : index
    %c0_43 = arith.constant 0 : index
    %99 = vector.load %arg1[%c2_41, %c0_42, %c0_43] : memref<4x16x128xbf16, #tpu.memory_space<vmem>>, vector<1x16x128xbf16>
    %100 = vector.shape_cast %99 : vector<1x16x128xbf16> to vector<16x128xbf16>
    %101 = arith.truncf %96 : vector<128x128xf32> to vector<128x128xbf16>
    %cst_44 = arith.constant dense<0.000000e+00> : vector<16x128xf32>
    %102 = tpu.matmul %100, %101, %cst_44 {dimension_numbers = #tpu.dot_dimension_numbers<[1], [0], [0], [1], [0, 0, 1, 1], [], []>} : vector<16x128xbf16>, vector<128x128xbf16>, vector<16x128xf32> -> vector<16x128xf32>
    %103 = tpu.reciprocal %98 {approx = true} : vector<1x128xf32> -> vector<1x128xf32>
    %104 = vector.broadcast %103 : vector<1x128xf32> to vector<16x128xf32>
    %105 = arith.mulf %102, %104 : vector<16x128xf32>
    %c32 = arith.constant 32 : index
    %c0_45 = arith.constant 0 : index
    %106 = vector.load %arg4[%c32, %c0_45] : memref<64x1xf32, #tpu.memory_space<vmem>>, vector<16x1xf32>
    %107 = vector.broadcast %106 : vector<16x1xf32> to vector<16x128xf32>
    %108 = arith.addf %105, %107 : vector<16x128xf32>
    %cst_46 = arith.constant 0.000000e+00 : f32
    %109 = vector.broadcast %cst_46 : f32 to vector<16x128xf32>
    %110 = arith.cmpf ogt, %108, %109 : vector<16x128xf32>
    %cst_47 = arith.constant 0.000000e+00 : f32
    %111 = vector.broadcast %cst_47 : f32 to vector<16x128xf32>
    %112 = arith.minimumf %108, %111 : vector<16x128xf32>
    %113 = math.exp %112 : vector<16x128xf32>
    %cst_48 = arith.constant 1.000000e+00 : f32
    %114 = vector.broadcast %cst_48 : f32 to vector<16x128xf32>
    %115 = arith.subf %113, %114 : vector<16x128xf32>
    %116 = arith.select %110, %108, %115 : vector<16x128xi1>, vector<16x128xf32>
    %c32_49 = arith.constant 32 : index
    %c0_50 = arith.constant 0 : index
    %117 = vector.load %arg6[%c32_49, %c0_50] : memref<64x128xf32, #tpu.memory_space<vmem>>, vector<16x128xf32>
    tpu.vector_store %arg6[%c32_49, %c0_50], %116 {strides = array<i32>} : memref<64x128xf32, #tpu.memory_space<vmem>>, vector<16x128xf32>,
    %c0_51 = arith.constant 0 : index
    %c3 = arith.constant 3 : index
    %118 = vector.load %arg2[%c0_51, %c3] : memref<128x4xf32, #tpu.memory_space<vmem>>, vector<128x1xf32>
    %119 = vector.extract_strided_slice %6 {offsets = [3, 0], sizes = [1, 128], strides = [1, 1]} : vector<4x128xf32> to vector<1x128xf32>
    %120 = vector.broadcast %118 : vector<128x1xf32> to vector<128x128xf32>
    %121 = vector.broadcast %119 : vector<1x128xf32> to vector<128x128xf32>
    %122 = arith.addf %120, %121 : vector<128x128xf32>
    %cst_52 = arith.constant 0.000000e+00 : f32
    %123 = vector.broadcast %cst_52 : f32 to vector<128x128xf32>
    %124 = arith.cmpf ogt, %122, %123 : vector<128x128xf32>
    %cst_53 = arith.constant 2.000000e-01 : f32
    %125 = vector.broadcast %cst_53 : f32 to vector<128x128xf32>
    %126 = arith.mulf %125, %122 : vector<128x128xf32>
    %127 = arith.select %124, %122, %126 : vector<128x128xi1>, vector<128x128xf32>
    %128 = arith.addf %127, %5 : vector<128x128xf32>
    %cst_54 = arith.constant dense<0xFF800000> : vector<128xf32>
    %129 = vector.multi_reduction <maximumf>, %128, %cst_54 [0] : vector<128x128xf32> to vector<128xf32>
    %130 = vector.shape_cast %129 : vector<128xf32> to vector<1x128xf32>
    %131 = vector.broadcast %130 : vector<1x128xf32> to vector<128x128xf32>
    %132 = arith.subf %128, %131 : vector<128x128xf32>
    %133 = math.exp %132 : vector<128x128xf32>
    %cst_55 = arith.constant dense<0.000000e+00> : vector<128xf32>
    %134 = vector.multi_reduction <add>, %133, %cst_55 [0] : vector<128x128xf32> to vector<128xf32>
    %135 = vector.shape_cast %134 : vector<128xf32> to vector<1x128xf32>
    %c3_56 = arith.constant 3 : index
    %c0_57 = arith.constant 0 : index
    %c0_58 = arith.constant 0 : index
    %136 = vector.load %arg1[%c3_56, %c0_57, %c0_58] : memref<4x16x128xbf16, #tpu.memory_space<vmem>>, vector<1x16x128xbf16>
    %137 = vector.shape_cast %136 : vector<1x16x128xbf16> to vector<16x128xbf16>
    %138 = arith.truncf %133 : vector<128x128xf32> to vector<128x128xbf16>
    %cst_59 = arith.constant dense<0.000000e+00> : vector<16x128xf32>
    %139 = tpu.matmul %137, %138, %cst_59 {dimension_numbers = #tpu.dot_dimension_numbers<[1], [0], [0], [1], [0, 0, 1, 1], [], []>} : vector<16x128xbf16>, vector<128x128xbf16>, vector<16x128xf32> -> vector<16x128xf32>
    %140 = tpu.reciprocal %135 {approx = true} : vector<1x128xf32> -> vector<1x128xf32>
    %141 = vector.broadcast %140 : vector<1x128xf32> to vector<16x128xf32>
    %142 = arith.mulf %139, %141 : vector<16x128xf32>
    %c48 = arith.constant 48 : index
    %c0_60 = arith.constant 0 : index
    %143 = vector.load %arg4[%c48, %c0_60] : memref<64x1xf32, #tpu.memory_space<vmem>>, vector<16x1xf32>
    %144 = vector.broadcast %143 : vector<16x1xf32> to vector<16x128xf32>
    %145 = arith.addf %142, %144 : vector<16x128xf32>
    %cst_61 = arith.constant 0.000000e+00 : f32
    %146 = vector.broadcast %cst_61 : f32 to vector<16x128xf32>
    %147 = arith.cmpf ogt, %145, %146 : vector<16x128xf32>
    %cst_62 = arith.constant 0.000000e+00 : f32
    %148 = vector.broadcast %cst_62 : f32 to vector<16x128xf32>
    %149 = arith.minimumf %145, %148 : vector<16x128xf32>
    %150 = math.exp %149 : vector<16x128xf32>
    %cst_63 = arith.constant 1.000000e+00 : f32
    %151 = vector.broadcast %cst_63 : f32 to vector<16x128xf32>
    %152 = arith.subf %150, %151 : vector<16x128xf32>
    %153 = arith.select %147, %145, %152 : vector<16x128xi1>, vector<16x128xf32>
    %c48_64 = arith.constant 48 : index
    %c0_65 = arith.constant 0 : index
    %154 = vector.load %arg6[%c48_64, %c0_65] : memref<64x128xf32, #tpu.memory_space<vmem>>, vector<16x128xf32>
    tpu.vector_store %arg6[%c48_64, %c0_65], %153 {strides = array<i32>} : memref<64x128xf32, #tpu.memory_space<vmem>>, vector<16x128xf32>,
    return
  }
  func.func @transform_0(%arg0: i32) -> (i32, i32, i32) {
    %c0_i32 = arith.constant 0 : i32
    %c0_i32_0 = arith.constant 0 : i32
    %c0_i32_1 = arith.constant 0 : i32
    %c0_i32_2 = arith.constant 0 : i32
    return %c0_i32, %c0_i32_0, %c0_i32_1 : i32, i32, i32
  }
  func.func @transform_1(%arg0: i32) -> (i32, i32) {
    %c0_i32 = arith.constant 0 : i32
    %c0_i32_0 = arith.constant 0 : i32
    %c0_i32_1 = arith.constant 0 : i32
    return %c0_i32, %c0_i32_0 : i32, i32
  }
  func.func @transform_2(%arg0: i32) -> (i32, i32) {
    %c0_i32 = arith.constant 0 : i32
    %c0_i32_0 = arith.constant 0 : i32
    return %c0_i32, %arg0 : i32, i32
  }
  func.func @transform_3(%arg0: i32) -> (i32, i32) {
    %c0_i32 = arith.constant 0 : i32
    %c0_i32_0 = arith.constant 0 : i32
    %c0_i32_1 = arith.constant 0 : i32
    return %c0_i32, %c0_i32_0 : i32, i32
  }
  func.func @transform_4(%arg0: i32) -> (i32, i32) {
    %c0_i32 = arith.constant 0 : i32
    %c0_i32_0 = arith.constant 0 : i32
    return %c0_i32, %arg0 : i32, i32
  }
  func.func @transform_5(%arg0: i32) -> (i32, i32) {
    %c0_i32 = arith.constant 0 : i32
    %c0_i32_0 = arith.constant 0 : i32
    return %c0_i32, %arg0 : i32, i32
  }
}

</mosaic_0001>

<llo_original>
// kernel: tpu_custom_call.1
$region0: #{tpu_custom_call.1}
  #allocation0 [shape = 'u32[]', space=smem, size = 0x4, offset = 0x4, fixed_abs, tag = 'smem constant byte address 0x4 - core index']
  #allocation1 [shape = 'u32[72,128]{1,0:T(1,128)}', space=vmem, size = 0x9000, scoped, tag = 'internal scratch']
  %s0 = inlined_call_operand.vmem [shape: bf16[4,16,128], index: 0, kind: input, shape index: {}]
  %s1 = inlined_call_operand.vmem [shape: f32[128,4], index: 1, kind: input, shape index: {}]
  %s2 = inlined_call_operand.vmem [shape: f32[4,128], index: 2, kind: input, shape index: {}]
  %s3 = inlined_call_operand.vmem [shape: f32[64,1], index: 3, kind: input, shape index: {}]
  %s4 = inlined_call_operand.vmem [shape: s8[128,128], index: 4, kind: input, shape index: {}]
  %s5 = inlined_call_operand.hbm [shape: f32[64,128], index: 5, kind: output, shape index: {}]
  %s6 = sld [smem:[#allocation0]]
  $region30: #{tpu_custom_call.1} parent=0
    _
  %s8 = ssub.s32 1, %s6
  %s9 = scalar_select 0, %s8, %s6
  $region1: #{tpu_custom_call.1} parent=0
    #allocation2 [shape = 'u8[32768]{0}', space=vmem, size = 0x8000, scoped, tag = 'output window, operand 0, single buffered']
    #allocation3 [shape = 's32[1]{0}', space=sflag, size = 0x4, scoped, tag = 'scoped memory for tpu_custom_call.1']
    %10 = vsyncpa [#allocation3], 0
    // Predicated region
    $region2: #{tpu_custom_call.1} parent=1 // pred_check
      _
    $region3: #{tpu_custom_call.1} parent=1 // pred_check_branch
      %12 = sbr.rel (0) target = $region5
    $region4: #{tpu_custom_call.1} parent=1 // pred_region
      _
    $region5: #{tpu_custom_call.1} parent=1 // pred_fallthru
      _
    // Predicated region
    $region6: #{tpu_custom_call.1} parent=1 // pred_check
      _
    $region7: #{tpu_custom_call.1} parent=1 // pred_check_branch
      %14 = sbr.rel (0) target = $region9
    $region8: #{tpu_custom_call.1} parent=1 // pred_region
      _
    $region9: #{tpu_custom_call.1} parent=1 // pred_fallthru
      _
    // Predicated region
    $region10: #{tpu_custom_call.1} parent=1 // pred_check
      _
    $region11: #{tpu_custom_call.1} parent=1 // pred_check_branch
      %16 = sbr.rel (0) target = $region13
    $region12: #{tpu_custom_call.1} parent=1 // pred_region
      _
    $region13: #{tpu_custom_call.1} parent=1 // pred_fallthru
      _
    // Predicated region
    $region14: #{tpu_custom_call.1} parent=1 // pred_check
      _
    $region15: #{tpu_custom_call.1} parent=1 // pred_check_branch
      %18 = sbr.rel (0) target = $region17
    $region16: #{tpu_custom_call.1} parent=1 // pred_region
      _
    $region17: #{tpu_custom_call.1} parent=1 // pred_fallthru
      _
    // Predicated region
    $region18: #{tpu_custom_call.1} parent=1 // pred_check
      _
    $region19: #{tpu_custom_call.1} parent=1 // pred_check_branch
      %20 = sbr.rel (0) target = $region21
    $region20: #{tpu_custom_call.1} parent=1 // pred_region
      _
    $region21: #{tpu_custom_call.1} parent=1 // pred_fallthru
      _
    %v21 = vld [vmem:[%s4] sm:$0xff]
    %v22 = vld [vmem:[%s4 + $0x8] sm:$0xff]
    %v23 = vld [vmem:[%s4 + $0x10] sm:$0xff]
    %v24 = vld [vmem:[%s4 + $0x18] sm:$0xff]
    %v25 = vunpack.c.0.s8 %v21
    %v26 = vunpack.c.1.s8 %v21
    %v27 = vunpack.c.2.s8 %v21
    %v28 = vunpack.c.3.s8 %v21
    %v29 = vunpack.c.0.s8 %v22
    %v30 = vunpack.c.1.s8 %v22
    %v31 = vunpack.c.2.s8 %v22
    %v32 = vunpack.c.3.s8 %v22
    %v33 = vunpack.c.0.s8 %v23
    %v34 = vunpack.c.1.s8 %v23
    %v35 = vunpack.c.2.s8 %v23
    %v36 = vunpack.c.3.s8 %v23
    %v37 = vunpack.c.0.s8 %v24
    %v38 = vunpack.c.1.s8 %v24
    %v39 = vunpack.c.2.s8 %v24
    %v40 = vunpack.c.3.s8 %v24
    %v41 = vcvt.s32.f32 %v25
    %v42 = vcvt.s32.f32 %v26
    %v43 = vcvt.s32.f32 %v27
    %v44 = vcvt.s32.f32 %v28
    %v45 = vcvt.s32.f32 %v29
    %v46 = vcvt.s32.f32 %v30
    %v47 = vcvt.s32.f32 %v31
    %v48 = vcvt.s32.f32 %v32
    %v49 = vcvt.s32.f32 %v33
    %v50 = vcvt.s32.f32 %v34
    %v51 = vcvt.s32.f32 %v35
    %v52 = vcvt.s32.f32 %v36
    %v53 = vcvt.s32.f32 %v37
    %v54 = vcvt.s32.f32 %v38
    %v55 = vcvt.s32.f32 %v39
    %v56 = vcvt.s32.f32 %v40
    %v57 = vsub.f32 %v41, 1.0
    %v58 = vsub.f32 %v42, 1.0
    %v59 = vsub.f32 %v43, 1.0
    %v60 = vsub.f32 %v44, 1.0
    %v61 = vsub.f32 %v45, 1.0
    %v62 = vsub.f32 %v46, 1.0
    %v63 = vsub.f32 %v47, 1.0
    %v64 = vsub.f32 %v48, 1.0
    %v65 = vsub.f32 %v49, 1.0
    %v66 = vsub.f32 %v50, 1.0
    %v67 = vsub.f32 %v51, 1.0
    %v68 = vsub.f32 %v52, 1.0
    %v69 = vsub.f32 %v53, 1.0
    %v70 = vsub.f32 %v54, 1.0
    %v71 = vsub.f32 %v55, 1.0
    %v72 = vsub.f32 %v56, 1.0
    %v73 = vmul.f32 %v57, 1e+30
    %v74 = vmul.f32 %v58, 1e+30
    %v75 = vmul.f32 %v59, 1e+30
    %v76 = vmul.f32 %v60, 1e+30
    %v77 = vmul.f32 %v61, 1e+30
    %v78 = vmul.f32 %v62, 1e+30
    %v79 = vmul.f32 %v63, 1e+30
    %v80 = vmul.f32 %v64, 1e+30
    %v81 = vmul.f32 %v65, 1e+30
    %v82 = vmul.f32 %v66, 1e+30
    %v83 = vmul.f32 %v67, 1e+30
    %v84 = vmul.f32 %v68, 1e+30
    %v85 = vmul.f32 %v69, 1e+30
    %v86 = vmul.f32 %v70, 1e+30
    %v87 = vmul.f32 %v71, 1e+30
    %v88 = vmul.f32 %v72, 1e+30
    %v89 = vld [vmem:[%s2] sm:$0xf]
    %v90 = vld [vmem:[%s1] sm:$0xff]
    %v91 = vld [vmem:[%s1 + $0x8] sm:$0xff]
    %v92 = vld [vmem:[%s1 + $0x10] sm:$0xff]
    %v93 = vld [vmem:[%s1 + $0x18] sm:$0xff]
    %v94 = vld [vmem:[%s1 + $0x20] sm:$0xff]
    %v95 = vld [vmem:[%s1 + $0x28] sm:$0xff]
    %v96 = vld [vmem:[%s1 + $0x30] sm:$0xff]
    %v97 = vld [vmem:[%s1 + $0x38] sm:$0xff]
    %v98 = vld [vmem:[%s1 + $0x40] sm:$0xff]
    %v99 = vld [vmem:[%s1 + $0x48] sm:$0xff]
    %v100 = vld [vmem:[%s1 + $0x50] sm:$0xff]
    %v101 = vld [vmem:[%s1 + $0x58] sm:$0xff]
    %v102 = vld [vmem:[%s1 + $0x60] sm:$0xff]
    %v103 = vld [vmem:[%s1 + $0x68] sm:$0xff]
    %v104 = vld [vmem:[%s1 + $0x70] sm:$0xff]
    %v105 = vld [vmem:[%s1 + $0x78] sm:$0xff]
    %107 = vset.pattern.permute.xlu0 0
    %108 = vperm.xlu0 %107, %v90
    %v109 = vpop.permute.xlu0 %108
    %112 = vset.pattern.permute.xlu0 0
    %113 = vperm.xlu0 %112, %v91
    %v114 = vpop.permute.xlu0 %113
    %117 = vset.pattern.permute.xlu0 0
    %118 = vperm.xlu0 %117, %v92
    %v119 = vpop.permute.xlu0 %118
    %122 = vset.pattern.permute.xlu0 0
    %123 = vperm.xlu0 %122, %v93
    %v124 = vpop.permute.xlu0 %123
    %127 = vset.pattern.permute.xlu0 0
    %128 = vperm.xlu0 %127, %v94
    %v129 = vpop.permute.xlu0 %128
    %132 = vset.pattern.permute.xlu0 0
    %133 = vperm.xlu0 %132, %v95
    %v134 = vpop.permute.xlu0 %133
    %137 = vset.pattern.permute.xlu0 0
    %138 = vperm.xlu0 %137, %v96
    %v139 = vpop.permute.xlu0 %138
    %142 = vset.pattern.permute.xlu0 0
    %143 = vperm.xlu0 %142, %v97
    %v144 = vpop.permute.xlu0 %143
    %147 = vset.pattern.permute.xlu0 0
    %148 = vperm.xlu0 %147, %v98
    %v149 = vpop.permute.xlu0 %148
    %152 = vset.pattern.permute.xlu0 0
    %153 = vperm.xlu0 %152, %v99
    %v154 = vpop.permute.xlu0 %153
    %157 = vset.pattern.permute.xlu0 0
    %158 = vperm.xlu0 %157, %v100
    %v159 = vpop.permute.xlu0 %158
    %162 = vset.pattern.permute.xlu0 0
    %163 = vperm.xlu0 %162, %v101
    %v164 = vpop.permute.xlu0 %163
    %167 = vset.pattern.permute.xlu0 0
    %168 = vperm.xlu0 %167, %v102
    %v169 = vpop.permute.xlu0 %168
    %172 = vset.pattern.permute.xlu0 0
    %173 = vperm.xlu0 %172, %v103
    %v174 = vpop.permute.xlu0 %173
    %177 = vset.pattern.permute.xlu0 0
    %178 = vperm.xlu0 %177, %v104
    %v179 = vpop.permute.xlu0 %178
    %182 = vset.pattern.permute.xlu0 0
    %183 = vperm.xlu0 %182, %v105
    %v184 = vpop.permute.xlu0 %183
    %v186 = vperm.slane %v89, 0
    %v187 = vadd.f32 %v109, %v186
    %v188 = vadd.f32 %v114, %v186
    %v189 = vadd.f32 %v119, %v186
    %v190 = vadd.f32 %v124, %v186
    %v191 = vadd.f32 %v129, %v186
    %v192 = vadd.f32 %v134, %v186
    %v193 = vadd.f32 %v139, %v186
    %v194 = vadd.f32 %v144, %v186
    %v195 = vadd.f32 %v149, %v186
    %v196 = vadd.f32 %v154, %v186
    %v197 = vadd.f32 %v159, %v186
    %v198 = vadd.f32 %v164, %v186
    %v199 = vadd.f32 %v169, %v186
    %v200 = vadd.f32 %v174, %v186
    %v201 = vadd.f32 %v179, %v186
    %v202 = vadd.f32 %v184, %v186
    %vm203 = vcmp.gt.f32.partialorder %v187, 0.0
    %vm204 = vcmp.gt.f32.partialorder %v188, 0.0
    %vm205 = vcmp.gt.f32.partialorder %v189, 0.0
    %vm206 = vcmp.gt.f32.partialorder %v190, 0.0
    %vm207 = vcmp.gt.f32.partialorder %v191, 0.0
    %vm208 = vcmp.gt.f32.partialorder %v192, 0.0
    %vm209 = vcmp.gt.f32.partialorder %v193, 0.0
    %vm210 = vcmp.gt.f32.partialorder %v194, 0.0
    %vm211 = vcmp.gt.f32.partialorder %v195, 0.0
    %vm212 = vcmp.gt.f32.partialorder %v196, 0.0
    %vm213 = vcmp.gt.f32.partialorder %v197, 0.0
    %vm214 = vcmp.gt.f32.partialorder %v198, 0.0
    %vm215 = vcmp.gt.f32.partialorder %v199, 0.0
    %vm216 = vcmp.gt.f32.partialorder %v200, 0.0
    %vm217 = vcmp.gt.f32.partialorder %v201, 0.0
    %vm218 = vcmp.gt.f32.partialorder %v202, 0.0
    %v219 = vmul.f32 %v187, 0.2
    %v220 = vmul.f32 %v188, 0.2
    %v221 = vmul.f32 %v189, 0.2
    %v222 = vmul.f32 %v190, 0.2
    %v223 = vmul.f32 %v191, 0.2
    %v224 = vmul.f32 %v192, 0.2
    %v225 = vmul.f32 %v193, 0.2
    %v226 = vmul.f32 %v194, 0.2
    %v227 = vmul.f32 %v195, 0.2
    %v228 = vmul.f32 %v196, 0.2
    %v229 = vmul.f32 %v197, 0.2
    %v230 = vmul.f32 %v198, 0.2
    %v231 = vmul.f32 %v199, 0.2
    %v232 = vmul.f32 %v200, 0.2
    %v233 = vmul.f32 %v201, 0.2
    %v234 = vmul.f32 %v202, 0.2
    %v235 = vsel %vm203, %v187, %v219
    %v236 = vsel %vm204, %v188, %v220
    %v237 = vsel %vm205, %v189, %v221
    %v238 = vsel %vm206, %v190, %v222
    %v239 = vsel %vm207, %v191, %v223
    %v240 = vsel %vm208, %v192, %v224
    %v241 = vsel %vm209, %v193, %v225
    %v242 = vsel %vm210, %v194, %v226
    %v243 = vsel %vm211, %v195, %v227
    %v244 = vsel %vm212, %v196, %v228
    %v245 = vsel %vm213, %v197, %v229
    %v246 = vsel %vm214, %v198, %v230
    %v247 = vsel %vm215, %v199, %v231
    %v248 = vsel %vm216, %v200, %v232
    %v249 = vsel %vm217, %v201, %v233
    %v250 = vsel %vm218, %v202, %v234
    %v251 = vadd.f32 %v235, %v73
    %v252 = vadd.f32 %v236, %v74
    %v253 = vadd.f32 %v237, %v75
    %v254 = vadd.f32 %v238, %v76
    %v255 = vadd.f32 %v239, %v77
    %v256 = vadd.f32 %v240, %v78
    %v257 = vadd.f32 %v241, %v79
    %v258 = vadd.f32 %v242, %v80
    %v259 = vadd.f32 %v243, %v81
    %v260 = vadd.f32 %v244, %v82
    %v261 = vadd.f32 %v245, %v83
    %v262 = vadd.f32 %v246, %v84
    %v263 = vadd.f32 %v247, %v85
    %v264 = vadd.f32 %v248, %v86
    %v265 = vadd.f32 %v249, %v87
    %v266 = vadd.f32 %v250, %v88
    %v267 = vmax.f32 %v251, %v255
    %v268 = vmax.f32 %v252, %v256
    %v269 = vmax.f32 %v253, %v257
    %v270 = vmax.f32 %v254, %v258
    %v271 = vmax.f32 %v267, %v259
    %v272 = vmax.f32 %v268, %v260
    %v273 = vmax.f32 %v269, %v261
    %v274 = vmax.f32 %v270, %v262
    %v275 = vmax.f32 %v271, %v263
    %v276 = vmax.f32 %v272, %v264
    %v277 = vmax.f32 %v273, %v265
    %v278 = vmax.f32 %v274, %v266
    %v279 = vmax.f32 %v275, %v276
    %v280 = vmax.f32 %v277, %v278
    %v281 = vmax.f32 %v279, %v280
    %v282 = vrot.slane %v281, 4
    %v283 = vmax.f32 %v281, %v282
    %v284 = vrot.slane %v283, 2
    %v285 = vmax.f32 %v283, %v284
    %v286 = vrot.slane %v285, 1
    %v287 = vmax.f32 %v285, %v286
    %v288 = vsub.f32 %v251, %v287
    %v289 = vsub.f32 %v252, %v287
    %v290 = vsub.f32 %v253, %v287
    %v291 = vsub.f32 %v254, %v287
    %v292 = vsub.f32 %v255, %v287
    %v293 = vsub.f32 %v256, %v287
    %v294 = vsub.f32 %v257, %v287
    %v295 = vsub.f32 %v258, %v287
    %v296 = vsub.f32 %v259, %v287
    %v297 = vsub.f32 %v260, %v287
    %v298 = vsub.f32 %v261, %v287
    %v299 = vsub.f32 %v262, %v287
    %v300 = vsub.f32 %v263, %v287
    %v301 = vsub.f32 %v264, %v287
    %v302 = vsub.f32 %v265, %v287
    %v303 = vsub.f32 %v266, %v287
    %v304 = vmul.f32 %v288, 1.442695
    %v305 = vpow.pop %v304
    %v306 = vmul.f32 %v289, 1.442695
    %v307 = vpow.pop %v306
    %v308 = vmul.f32 %v290, 1.442695
    %v309 = vpow.pop %v308
    %v310 = vmul.f32 %v291, 1.442695
    %v311 = vpow.pop %v310
    %v312 = vmul.f32 %v292, 1.442695
    %v313 = vpow.pop %v312
    %v314 = vmul.f32 %v293, 1.442695
    %v315 = vpow.pop %v314
    %v316 = vmul.f32 %v294, 1.442695
    %v317 = vpow.pop %v316
    %v318 = vmul.f32 %v295, 1.442695
    %v319 = vpow.pop %v318
    %v320 = vmul.f32 %v296, 1.442695
    %v321 = vpow.pop %v320
    %v322 = vmul.f32 %v297, 1.442695
    %v323 = vpow.pop %v322
    %v324 = vmul.f32 %v298, 1.442695
    %v325 = vpow.pop %v324
    %v326 = vmul.f32 %v299, 1.442695
    %v327 = vpow.pop %v326
    %v328 = vmul.f32 %v300, 1.442695
    %v329 = vpow.pop %v328
    %v330 = vmul.f32 %v301, 1.442695
    %v331 = vpow.pop %v330
    %v332 = vmul.f32 %v302, 1.442695
    %v333 = vpow.pop %v332
    %v334 = vmul.f32 %v303, 1.442695
    %v335 = vpow.pop %v334
    %v336 = vadd.f32 %v305, %v307
    %v337 = vadd.f32 %v336, %v309
    %v338 = vadd.f32 %v337, %v311
    %v339 = vadd.f32 %v338, %v313
    %v340 = vadd.f32 %v339, %v315
    %v341 = vadd.f32 %v340, %v317
    %v342 = vadd.f32 %v341, %v319
    %v343 = vadd.f32 %v342, %v321
    %v344 = vadd.f32 %v343, %v323
    %v345 = vadd.f32 %v344, %v325
    %v346 = vadd.f32 %v345, %v327
    %v347 = vadd.f32 %v346, %v329
    %v348 = vadd.f32 %v347, %v331
    %v349 = vadd.f32 %v348, %v333
    %v350 = vadd.f32 %v349, %v335
    %v351 = vrot.slane %v350, 4
    %v352 = vadd.f32 %v350, %v351
    %v353 = vrot.slane %v352, 2
    %v354 = vadd.f32 %v352, %v353
    %v355 = vrot.slane %v354, 1
    %v356 = vadd.f32 %v354, %v355
    %v357 = vld [vmem:[%s0] sm:$0xf]
    %v358 = vld [vmem:[%s0 + $0x4] sm:$0xf]
    %v359 = vpack.c.bf16 %v307, %v305
    %v360 = vpack.c.bf16 %v311, %v309
    %v361 = vpack.c.bf16 %v315, %v313
    %v362 = vpack.c.bf16 %v319, %v317
    %v363 = vpack.c.bf16 %v323, %v321
    %v364 = vpack.c.bf16 %v327, %v325
    %v365 = vpack.c.bf16 %v331, %v329
    %v366 = vpack.c.bf16 %v335, %v333
    %v369 = vunpack.c.l.b16 %v357
    %v370 = vunpack.c.l.b16 %v358
    %v371 = vpack.c.b16 %v370, %v369
    %373 = vmatpush.bf16.msra.mxu0 %v366
    %374 = vmatpush.bf16.msra.mxu0 %v365
    %375 = vmatpush.bf16.msra.mxu0 %v364
    %376 = vmatpush.bf16.msra.mxu0 %v363
    %377 = vmatpush.bf16.msra.mxu0 %v362
    %378 = vmatpush.bf16.msra.mxu0 %v361
    %379 = vmatpush.bf16.msra.mxu0 %v360
    %380 = vmatpush.bf16.msra.mxu0 %v359
    %381 = vmatmul.bf16.gmra.mxu0 %v371
    %v382 = vpop.f32.mrf.mxu0
    %v383 = vadd.f32 0.0, %v382
    %v384 = vpop.f32.mrf.mxu0
    %v385 = vadd.f32 0.0, %v384
    %386 = vdwg.mxu0
    %v387 = vrcp.pop %v356
    %v388 = vmul.f32 %v383, %v387
    %v389 = vmul.f32 %v385, %v387
    %v390 = vld [vmem:[%s3] sm:$0xff]
    %v391 = vld [vmem:[%s3 + $0x8] sm:$0xff]
    %393 = vset.pattern.permute.xlu0 0
    %394 = vperm.xlu0 %393, %v390
    %v395 = vpop.permute.xlu0 %394
    %398 = vset.pattern.permute.xlu0 0
    %399 = vperm.xlu0 %398, %v391
    %v400 = vpop.permute.xlu0 %399
    %v402 = vadd.f32 %v388, %v395
    %v403 = vadd.f32 %v389, %v400
    %vm404 = vcmp.gt.f32.partialorder %v402, 0.0
    %vm405 = vcmp.gt.f32.partialorder %v403, 0.0
    %v406 = vmin.f32 %v402, 0.0
    %v407 = vmin.f32 %v403, 0.0
    %v408 = vmul.f32 %v406, 1.442695
    %v409 = vpow.pop %v408
    %v410 = vmul.f32 %v407, 1.442695
    %v411 = vpow.pop %v410
    %v412 = vsub.f32 %v409, 1.0
    %v413 = vsub.f32 %v411, 1.0
    %v414 = vsel %vm404, %v402, %v412
    %v415 = vsel %vm405, %v403, %v413
    %416 = vst [vmem:[#allocation2] sm:$0xff] %v414
    %417 = vst [vmem:[#allocation2 + $0x8] sm:$0xff] %v415
    %v418 = vld [vmem:[%s1] sm:$0xff]
    %v419 = vld [vmem:[%s1 + $0x8] sm:$0xff]
    %v420 = vld [vmem:[%s1 + $0x10] sm:$0xff]
    %v421 = vld [vmem:[%s1 + $0x18] sm:$0xff]
    %v422 = vld [vmem:[%s1 + $0x20] sm:$0xff]
    %v423 = vld [vmem:[%s1 + $0x28] sm:$0xff]
    %v424 = vld [vmem:[%s1 + $0x30] sm:$0xff]
    %v425 = vld [vmem:[%s1 + $0x38] sm:$0xff]
    %v426 = vld [vmem:[%s1 + $0x40] sm:$0xff]
    %v427 = vld [vmem:[%s1 + $0x48] sm:$0xff]
    %v428 = vld [vmem:[%s1 + $0x50] sm:$0xff]
    %v429 = vld [vmem:[%s1 + $0x58] sm:$0xff]
    %v430 = vld [vmem:[%s1 + $0x60] sm:$0xff]
    %v431 = vld [vmem:[%s1 + $0x68] sm:$0xff]
    %v432 = vld [vmem:[%s1 + $0x70] sm:$0xff]
    %v433 = vld [vmem:[%s1 + $0x78] sm:$0xff]
    %435 = vset.pattern.permute.xlu0 1
    %436 = vperm.xlu0 %435, %v418
    %v437 = vpop.permute.xlu0 %436
    %440 = vset.pattern.permute.xlu0 1
    %441 = vperm.xlu0 %440, %v419
    %v442 = vpop.permute.xlu0 %441
    %445 = vset.pattern.permute.xlu0 1
    %446 = vperm.xlu0 %445, %v420
    %v447 = vpop.permute.xlu0 %446
    %450 = vset.pattern.permute.xlu0 1
    %451 = vperm.xlu0 %450, %v421
    %v452 = vpop.permute.xlu0 %451
    %455 = vset.pattern.permute.xlu0 1
    %456 = vperm.xlu0 %455, %v422
    %v457 = vpop.permute.xlu0 %456
    %460 = vset.pattern.permute.xlu0 1
    %461 = vperm.xlu0 %460, %v423
    %v462 = vpop.permute.xlu0 %461
    %465 = vset.pattern.permute.xlu0 1
    %466 = vperm.xlu0 %465, %v424
    %v467 = vpop.permute.xlu0 %466
    %470 = vset.pattern.permute.xlu0 1
    %471 = vperm.xlu0 %470, %v425
    %v472 = vpop.permute.xlu0 %471
    %475 = vset.pattern.permute.xlu0 1
    %476 = vperm.xlu0 %475, %v426
    %v477 = vpop.permute.xlu0 %476
    %480 = vset.pattern.permute.xlu0 1
    %481 = vperm.xlu0 %480, %v427
    %v482 = vpop.permute.xlu0 %481
    %485 = vset.pattern.permute.xlu0 1
    %486 = vperm.xlu0 %485, %v428
    %v487 = vpop.permute.xlu0 %486
    %490 = vset.pattern.permute.xlu0 1
    %491 = vperm.xlu0 %490, %v429
    %v492 = vpop.permute.xlu0 %491
    %495 = vset.pattern.permute.xlu0 1
    %496 = vperm.xlu0 %495, %v430
    %v497 = vpop.permute.xlu0 %496
    %500 = vset.pattern.permute.xlu0 1
    %501 = vperm.xlu0 %500, %v431
    %v502 = vpop.permute.xlu0 %501
    %505 = vset.pattern.permute.xlu0 1
    %506 = vperm.xlu0 %505, %v432
    %v507 = vpop.permute.xlu0 %506
    %510 = vset.pattern.permute.xlu0 1
    %511 = vperm.xlu0 %510, %v433
    %v512 = vpop.permute.xlu0 %511
    %v514 = vperm.slane %v89, 1
    %v515 = vadd.f32 %v437, %v514
    %v516 = vadd.f32 %v442, %v514
    %v517 = vadd.f32 %v447, %v514
    %v518 = vadd.f32 %v452, %v514
    %v519 = vadd.f32 %v457, %v514
    %v520 = vadd.f32 %v462, %v514
    %v521 = vadd.f32 %v467, %v514
    %v522 = vadd.f32 %v472, %v514
    %v523 = vadd.f32 %v477, %v514
    %v524 = vadd.f32 %v482, %v514
    %v525 = vadd.f32 %v487, %v514
    %v526 = vadd.f32 %v492, %v514
    %v527 = vadd.f32 %v497, %v514
    %v528 = vadd.f32 %v502, %v514
    %v529 = vadd.f32 %v507, %v514
    %v530 = vadd.f32 %v512, %v514
    %vm531 = vcmp.gt.f32.partialorder %v515, 0.0
    %vm532 = vcmp.gt.f32.partialorder %v516, 0.0
    %vm533 = vcmp.gt.f32.partialorder %v517, 0.0
    %vm534 = vcmp.gt.f32.partialorder %v518, 0.0
    %vm535 = vcmp.gt.f32.partialorder %v519, 0.0
    %vm536 = vcmp.gt.f32.partialorder %v520, 0.0
    %vm537 = vcmp.gt.f32.partialorder %v521, 0.0
    %vm538 = vcmp.gt.f32.partialorder %v522, 0.0
    %vm539 = vcmp.gt.f32.partialorder %v523, 0.0
    %vm540 = vcmp.gt.f32.partialorder %v524, 0.0
    %vm541 = vcmp.gt.f32.partialorder %v525, 0.0
    %vm542 = vcmp.gt.f32.partialorder %v526, 0.0
    %vm543 = vcmp.gt.f32.partialorder %v527, 0.0
    %vm544 = vcmp.gt.f32.partialorder %v528, 0.0
    %vm545 = vcmp.gt.f32.partialorder %v529, 0.0
    %vm546 = vcmp.gt.f32.partialorder %v530, 0.0
    %v547 = vmul.f32 %v515, 0.2
    %v548 = vmul.f32 %v516, 0.2
    %v549 = vmul.f32 %v517, 0.2
    %v550 = vmul.f32 %v518, 0.2
    %v551 = vmul.f32 %v519, 0.2
    %v552 = vmul.f32 %v520, 0.2
    %v553 = vmul.f32 %v521, 0.2
    %v554 = vmul.f32 %v522, 0.2
    %v555 = vmul.f32 %v523, 0.2
    %v556 = vmul.f32 %v524, 0.2
    %v557 = vmul.f32 %v525, 0.2
    %v558 = vmul.f32 %v526, 0.2
    %v559 = vmul.f32 %v527, 0.2
    %v560 = vmul.f32 %v528, 0.2
    %v561 = vmul.f32 %v529, 0.2
    %v562 = vmul.f32 %v530, 0.2
    %v563 = vsel %vm531, %v515, %v547
    %v564 = vsel %vm532, %v516, %v548
    %v565 = vsel %vm533, %v517, %v549
    %v566 = vsel %vm534, %v518, %v550
    %v567 = vsel %vm535, %v519, %v551
    %v568 = vsel %vm536, %v520, %v552
    %v569 = vsel %vm537, %v521, %v553
    %v570 = vsel %vm538, %v522, %v554
    %v571 = vsel %vm539, %v523, %v555
    %v572 = vsel %vm540, %v524, %v556
    %v573 = vsel %vm541, %v525, %v557
    %v574 = vsel %vm542, %v526, %v558
    %v575 = vsel %vm543, %v527, %v559
    %v576 = vsel %vm544, %v528, %v560
    %v577 = vsel %vm545, %v529, %v561
    %v578 = vsel %vm546, %v530, %v562
    %v579 = vadd.f32 %v563, %v73
    %v580 = vadd.f32 %v564, %v74
    %v581 = vadd.f32 %v565, %v75
    %v582 = vadd.f32 %v566, %v76
    %v583 = vadd.f32 %v567, %v77
    %v584 = vadd.f32 %v568, %v78
    %v585 = vadd.f32 %v569, %v79
    %v586 = vadd.f32 %v570, %v80
    %v587 = vadd.f32 %v571, %v81
    %v588 = vadd.f32 %v572, %v82
    %v589 = vadd.f32 %v573, %v83
    %v590 = vadd.f32 %v574, %v84
    %v591 = vadd.f32 %v575, %v85
    %v592 = vadd.f32 %v576, %v86
    %v593 = vadd.f32 %v577, %v87
    %v594 = vadd.f32 %v578, %v88
    %v595 = vmax.f32 %v579, %v583
    %v596 = vmax.f32 %v580, %v584
    %v597 = vmax.f32 %v581, %v585
    %v598 = vmax.f32 %v582, %v586
    %v599 = vmax.f32 %v595, %v587
    %v600 = vmax.f32 %v596, %v588
    %v601 = vmax.f32 %v597, %v589
    %v602 = vmax.f32 %v598, %v590
    %v603 = vmax.f32 %v599, %v591
    %v604 = vmax.f32 %v600, %v592
    %v605 = vmax.f32 %v601, %v593
    %v606 = vmax.f32 %v602, %v594
    %v607 = vmax.f32 %v603, %v604
    %v608 = vmax.f32 %v605, %v606
    %v609 = vmax.f32 %v607, %v608
    %v610 = vrot.slane %v609, 4
    %v611 = vmax.f32 %v609, %v610
    %v612 = vrot.slane %v611, 2
    %v613 = vmax.f32 %v611, %v612
    %v614 = vrot.slane %v613, 1
    %v615 = vmax.f32 %v613, %v614
    %v616 = vsub.f32 %v579, %v615
    %v617 = vsub.f32 %v580, %v615
    %v618 = vsub.f32 %v581, %v615
    %v619 = vsub.f32 %v582, %v615
    %v620 = vsub.f32 %v583, %v615
    %v621 = vsub.f32 %v584, %v615
    %v622 = vsub.f32 %v585, %v615
    %v623 = vsub.f32 %v586, %v615
    %v624 = vsub.f32 %v587, %v615
    %v625 = vsub.f32 %v588, %v615
    %v626 = vsub.f32 %v589, %v615
    %v627 = vsub.f32 %v590, %v615
    %v628 = vsub.f32 %v591, %v615
    %v629 = vsub.f32 %v592, %v615
    %v630 = vsub.f32 %v593, %v615
    %v631 = vsub.f32 %v594, %v615
    %v632 = vmul.f32 %v616, 1.442695
    %v633 = vpow.pop %v632
    %v634 = vmul.f32 %v617, 1.442695
    %v635 = vpow.pop %v634
    %v636 = vmul.f32 %v618, 1.442695
    %v637 = vpow.pop %v636
    %v638 = vmul.f32 %v619, 1.442695
    %v639 = vpow.pop %v638
    %v640 = vmul.f32 %v620, 1.442695
    %v641 = vpow.pop %v640
    %v642 = vmul.f32 %v621, 1.442695
    %v643 = vpow.pop %v642
    %v644 = vmul.f32 %v622, 1.442695
    %v645 = vpow.pop %v644
    %v646 = vmul.f32 %v623, 1.442695
    %v647 = vpow.pop %v646
    %v648 = vmul.f32 %v624, 1.442695
    %v649 = vpow.pop %v648
    %v650 = vmul.f32 %v625, 1.442695
    %v651 = vpow.pop %v650
    %v652 = vmul.f32 %v626, 1.442695
    %v653 = vpow.pop %v652
    %v654 = vmul.f32 %v627, 1.442695
    %v655 = vpow.pop %v654
    %v656 = vmul.f32 %v628, 1.442695
    %v657 = vpow.pop %v656
    %v658 = vmul.f32 %v629, 1.442695
    %v659 = vpow.pop %v658
    %v660 = vmul.f32 %v630, 1.442695
    %v661 = vpow.pop %v660
    %v662 = vmul.f32 %v631, 1.442695
    %v663 = vpow.pop %v662
    %v664 = vadd.f32 %v633, %v635
    %v665 = vadd.f32 %v664, %v637
    %v666 = vadd.f32 %v665, %v639
    %v667 = vadd.f32 %v666, %v641
    %v668 = vadd.f32 %v667, %v643
    %v669 = vadd.f32 %v668, %v645
    %v670 = vadd.f32 %v669, %v647
    %v671 = vadd.f32 %v670, %v649
    %v672 = vadd.f32 %v671, %v651
    %v673 = vadd.f32 %v672, %v653
    %v674 = vadd.f32 %v673, %v655
    %v675 = vadd.f32 %v674, %v657
    %v676 = vadd.f32 %v675, %v659
    %v677 = vadd.f32 %v676, %v661
    %v678 = vadd.f32 %v677, %v663
    %v679 = vrot.slane %v678, 4
    %v680 = vadd.f32 %v678, %v679
    %v681 = vrot.slane %v680, 2
    %v682 = vadd.f32 %v680, %v681
    %v683 = vrot.slane %v682, 1
    %v684 = vadd.f32 %v682, %v683
    %s685 = scalar_lea.vmem %s0, 8
    %v686 = vld [vmem:[%s685] sm:$0xf]
    %v687 = vld [vmem:[%s685 + $0x4] sm:$0xf]
    %v688 = vpack.c.bf16 %v635, %v633
    %v689 = vpack.c.bf16 %v639, %v637
    %v690 = vpack.c.bf16 %v643, %v641
    %v691 = vpack.c.bf16 %v647, %v645
    %v692 = vpack.c.bf16 %v651, %v649
    %v693 = vpack.c.bf16 %v655, %v653
    %v694 = vpack.c.bf16 %v659, %v657
    %v695 = vpack.c.bf16 %v663, %v661
    %v698 = vunpack.c.l.b16 %v686
    %v699 = vunpack.c.l.b16 %v687
    %v700 = vpack.c.b16 %v699, %v698
    %702 = vmatpush.bf16.msra.mxu0 %v695
    %703 = vmatpush.bf16.msra.mxu0 %v694
    %704 = vmatpush.bf16.msra.mxu0 %v693
    %705 = vmatpush.bf16.msra.mxu0 %v692
    %706 = vmatpush.bf16.msra.mxu0 %v691
    %707 = vmatpush.bf16.msra.mxu0 %v690
    %708 = vmatpush.bf16.msra.mxu0 %v689
    %709 = vmatpush.bf16.msra.mxu0 %v688
    %710 = vmatmul.bf16.gmra.mxu0 %v700
    %v711 = vpop.f32.mrf.mxu0
    %v712 = vadd.f32 0.0, %v711
    %v713 = vpop.f32.mrf.mxu0
    %v714 = vadd.f32 0.0, %v713
    %715 = vdwg.mxu0
    %v716 = vrcp.pop %v684
    %v717 = vmul.f32 %v712, %v716
    %v718 = vmul.f32 %v714, %v716
    %v719 = vld [vmem:[%s3 + $0x10] sm:$0xff]
    %v720 = vld [vmem:[%s3 + $0x18] sm:$0xff]
    %722 = vset.pattern.permute.xlu0 0
    %723 = vperm.xlu0 %722, %v719
    %v724 = vpop.permute.xlu0 %723
    %727 = vset.pattern.permute.xlu0 0
    %728 = vperm.xlu0 %727, %v720
    %v729 = vpop.permute.xlu0 %728
    %v731 = vadd.f32 %v717, %v724
    %v732 = vadd.f32 %v718, %v729
    %vm733 = vcmp.gt.f32.partialorder %v731, 0.0
    %vm734 = vcmp.gt.f32.partialorder %v732, 0.0
    %v735 = vmin.f32 %v731, 0.0
    %v736 = vmin.f32 %v732, 0.0
    %v737 = vmul.f32 %v735, 1.442695
    %v738 = vpow.pop %v737
    %v739 = vmul.f32 %v736, 1.442695
    %v740 = vpow.pop %v739
    %v741 = vsub.f32 %v738, 1.0
    %v742 = vsub.f32 %v740, 1.0
    %v743 = vsel %vm733, %v731, %v741
    %v744 = vsel %vm734, %v732, %v742
    %745 = vst [vmem:[#allocation2 + $0x10] sm:$0xff] %v743
    %746 = vst [vmem:[#allocation2 + $0x18] sm:$0xff] %v744
    %v747 = vld [vmem:[%s1] sm:$0xff]
    %v748 = vld [vmem:[%s1 + $0x8] sm:$0xff]
    %v749 = vld [vmem:[%s1 + $0x10] sm:$0xff]
    %v750 = vld [vmem:[%s1 + $0x18] sm:$0xff]
    %v751 = vld [vmem:[%s1 + $0x20] sm:$0xff]
    %v752 = vld [vmem:[%s1 + $0x28] sm:$0xff]
    %v753 = vld [vmem:[%s1 + $0x30] sm:$0xff]
    %v754 = vld [vmem:[%s1 + $0x38] sm:$0xff]
    %v755 = vld [vmem:[%s1 + $0x40] sm:$0xff]
    %v756 = vld [vmem:[%s1 + $0x48] sm:$0xff]
    %v757 = vld [vmem:[%s1 + $0x50] sm:$0xff]
    %v758 = vld [vmem:[%s1 + $0x58] sm:$0xff]
    %v759 = vld [vmem:[%s1 + $0x60] sm:$0xff]
    %v760 = vld [vmem:[%s1 + $0x68] sm:$0xff]
    %v761 = vld [vmem:[%s1 + $0x70] sm:$0xff]
    %v762 = vld [vmem:[%s1 + $0x78] sm:$0xff]
    %764 = vset.pattern.permute.xlu0 2
    %765 = vperm.xlu0 %764, %v747
    %v766 = vpop.permute.xlu0 %765
    %769 = vset.pattern.permute.xlu0 2
    %770 = vperm.xlu0 %769, %v748
    %v771 = vpop.permute.xlu0 %770
    %774 = vset.pattern.permute.xlu0 2
    %775 = vperm.xlu0 %774, %v749
    %v776 = vpop.permute.xlu0 %775
    %779 = vset.pattern.permute.xlu0 2
    %780 = vperm.xlu0 %779, %v750
    %v781 = vpop.permute.xlu0 %780
    %784 = vset.pattern.permute.xlu0 2
    %785 = vperm.xlu0 %784, %v751
    %v786 = vpop.permute.xlu0 %785
    %789 = vset.pattern.permute.xlu0 2
    %790 = vperm.xlu0 %789, %v752
    %v791 = vpop.permute.xlu0 %790
    %794 = vset.pattern.permute.xlu0 2
    %795 = vperm.xlu0 %794, %v753
    %v796 = vpop.permute.xlu0 %795
    %799 = vset.pattern.permute.xlu0 2
    %800 = vperm.xlu0 %799, %v754
    %v801 = vpop.permute.xlu0 %800
    %804 = vset.pattern.permute.xlu0 2
    %805 = vperm.xlu0 %804, %v755
    %v806 = vpop.permute.xlu0 %805
    %809 = vset.pattern.permute.xlu0 2
    %810 = vperm.xlu0 %809, %v756
    %v811 = vpop.permute.xlu0 %810
    %814 = vset.pattern.permute.xlu0 2
    %815 = vperm.xlu0 %814, %v757
    %v816 = vpop.permute.xlu0 %815
    %819 = vset.pattern.permute.xlu0 2
    %820 = vperm.xlu0 %819, %v758
    %v821 = vpop.permute.xlu0 %820
    %824 = vset.pattern.permute.xlu0 2
    %825 = vperm.xlu0 %824, %v759
    %v826 = vpop.permute.xlu0 %825
    %829 = vset.pattern.permute.xlu0 2
    %830 = vperm.xlu0 %829, %v760
    %v831 = vpop.permute.xlu0 %830
    %834 = vset.pattern.permute.xlu0 2
    %835 = vperm.xlu0 %834, %v761
    %v836 = vpop.permute.xlu0 %835
    %839 = vset.pattern.permute.xlu0 2
    %840 = vperm.xlu0 %839, %v762
    %v841 = vpop.permute.xlu0 %840
    %v843 = vperm.slane %v89, 2
    %v844 = vadd.f32 %v766, %v843
    %v845 = vadd.f32 %v771, %v843
    %v846 = vadd.f32 %v776, %v843
    %v847 = vadd.f32 %v781, %v843
    %v848 = vadd.f32 %v786, %v843
    %v849 = vadd.f32 %v791, %v843
    %v850 = vadd.f32 %v796, %v843
    %v851 = vadd.f32 %v801, %v843
    %v852 = vadd.f32 %v806, %v843
    %v853 = vadd.f32 %v811, %v843
    %v854 = vadd.f32 %v816, %v843
    %v855 = vadd.f32 %v821, %v843
    %v856 = vadd.f32 %v826, %v843
    %v857 = vadd.f32 %v831, %v843
    %v858 = vadd.f32 %v836, %v843
    %v859 = vadd.f32 %v841, %v843
    %vm860 = vcmp.gt.f32.partialorder %v844, 0.0
    %vm861 = vcmp.gt.f32.partialorder %v845, 0.0
    %vm862 = vcmp.gt.f32.partialorder %v846, 0.0
    %vm863 = vcmp.gt.f32.partialorder %v847, 0.0
    %vm864 = vcmp.gt.f32.partialorder %v848, 0.0
    %vm865 = vcmp.gt.f32.partialorder %v849, 0.0
    %vm866 = vcmp.gt.f32.partialorder %v850, 0.0
    %vm867 = vcmp.gt.f32.partialorder %v851, 0.0
    %vm868 = vcmp.gt.f32.partialorder %v852, 0.0
    %vm869 = vcmp.gt.f32.partialorder %v853, 0.0
    %vm870 = vcmp.gt.f32.partialorder %v854, 0.0
    %vm871 = vcmp.gt.f32.partialorder %v855, 0.0
    %vm872 = vcmp.gt.f32.partialorder %v856, 0.0
    %vm873 = vcmp.gt.f32.partialorder %v857, 0.0
    %vm874 = vcmp.gt.f32.partialorder %v858, 0.0
    %vm875 = vcmp.gt.f32.partialorder %v859, 0.0
    %v876 = vmul.f32 %v844, 0.2
    %v877 = vmul.f32 %v845, 0.2
    %v878 = vmul.f32 %v846, 0.2
    %v879 = vmul.f32 %v847, 0.2
    %v880 = vmul.f32 %v848, 0.2
    %v881 = vmul.f32 %v849, 0.2
    %v882 = vmul.f32 %v850, 0.2
    %v883 = vmul.f32 %v851, 0.2
    %v884 = vmul.f32 %v852, 0.2
    %v885 = vmul.f32 %v853, 0.2
    %v886 = vmul.f32 %v854, 0.2
    %v887 = vmul.f32 %v855, 0.2
    %v888 = vmul.f32 %v856, 0.2
    %v889 = vmul.f32 %v857, 0.2
    %v890 = vmul.f32 %v858, 0.2
    %v891 = vmul.f32 %v859, 0.2
    %v892 = vsel %vm860, %v844, %v876
    %v893 = vsel %vm861, %v845, %v877
    %v894 = vsel %vm862, %v846, %v878
    %v895 = vsel %vm863, %v847, %v879
    %v896 = vsel %vm864, %v848, %v880
    %v897 = vsel %vm865, %v849, %v881
    %v898 = vsel %vm866, %v850, %v882
    %v899 = vsel %vm867, %v851, %v883
    %v900 = vsel %vm868, %v852, %v884
    %v901 = vsel %vm869, %v853, %v885
    %v902 = vsel %vm870, %v854, %v886
    %v903 = vsel %vm871, %v855, %v887
    %v904 = vsel %vm872, %v856, %v888
    %v905 = vsel %vm873, %v857, %v889
    %v906 = vsel %vm874, %v858, %v890
    %v907 = vsel %vm875, %v859, %v891
    %v908 = vadd.f32 %v892, %v73
    %v909 = vadd.f32 %v893, %v74
    %v910 = vadd.f32 %v894, %v75
    %v911 = vadd.f32 %v895, %v76
    %v912 = vadd.f32 %v896, %v77
    %v913 = vadd.f32 %v897, %v78
    %v914 = vadd.f32 %v898, %v79
    %v915 = vadd.f32 %v899, %v80
    %v916 = vadd.f32 %v900, %v81
    %v917 = vadd.f32 %v901, %v82
    %v918 = vadd.f32 %v902, %v83
    %v919 = vadd.f32 %v903, %v84
    %v920 = vadd.f32 %v904, %v85
    %v921 = vadd.f32 %v905, %v86
    %v922 = vadd.f32 %v906, %v87
    %v923 = vadd.f32 %v907, %v88
    %v924 = vmax.f32 %v908, %v912
    %v925 = vmax.f32 %v909, %v913
    %v926 = vmax.f32 %v910, %v914
    %v927 = vmax.f32 %v911, %v915
    %v928 = vmax.f32 %v924, %v916
    %v929 = vmax.f32 %v925, %v917
    %v930 = vmax.f32 %v926, %v918
    %v931 = vmax.f32 %v927, %v919
    %v932 = vmax.f32 %v928, %v920
    %v933 = vmax.f32 %v929, %v921
    %v934 = vmax.f32 %v930, %v922
    %v935 = vmax.f32 %v931, %v923
    %v936 = vmax.f32 %v932, %v933
    %v937 = vmax.f32 %v934, %v935
    %v938 = vmax.f32 %v936, %v937
    %v939 = vrot.slane %v938, 4
    %v940 = vmax.f32 %v938, %v939
    %v941 = vrot.slane %v940, 2
    %v942 = vmax.f32 %v940, %v941
    %v943 = vrot.slane %v942, 1
    %v944 = vmax.f32 %v942, %v943
    %v945 = vsub.f32 %v908, %v944
    %v946 = vsub.f32 %v909, %v944
    %v947 = vsub.f32 %v910, %v944
    %v948 = vsub.f32 %v911, %v944
    %v949 = vsub.f32 %v912, %v944
    %v950 = vsub.f32 %v913, %v944
    %v951 = vsub.f32 %v914, %v944
    %v952 = vsub.f32 %v915, %v944
    %v953 = vsub.f32 %v916, %v944
    %v954 = vsub.f32 %v917, %v944
    %v955 = vsub.f32 %v918, %v944
    %v956 = vsub.f32 %v919, %v944
    %v957 = vsub.f32 %v920, %v944
    %v958 = vsub.f32 %v921, %v944
    %v959 = vsub.f32 %v922, %v944
    %v960 = vsub.f32 %v923, %v944
    %v961 = vmul.f32 %v945, 1.442695
    %v962 = vpow.pop %v961
    %v963 = vmul.f32 %v946, 1.442695
    %v964 = vpow.pop %v963
    %v965 = vmul.f32 %v947, 1.442695
    %v966 = vpow.pop %v965
    %v967 = vmul.f32 %v948, 1.442695
    %v968 = vpow.pop %v967
    %v969 = vmul.f32 %v949, 1.442695
    %v970 = vpow.pop %v969
    %v971 = vmul.f32 %v950, 1.442695
    %v972 = vpow.pop %v971
    %v973 = vmul.f32 %v951, 1.442695
    %v974 = vpow.pop %v973
    %v975 = vmul.f32 %v952, 1.442695
    %v976 = vpow.pop %v975
    %v977 = vmul.f32 %v953, 1.442695
    %v978 = vpow.pop %v977
    %v979 = vmul.f32 %v954, 1.442695
    %v980 = vpow.pop %v979
    %v981 = vmul.f32 %v955, 1.442695
    %v982 = vpow.pop %v981
    %v983 = vmul.f32 %v956, 1.442695
    %v984 = vpow.pop %v983
    %v985 = vmul.f32 %v957, 1.442695
    %v986 = vpow.pop %v985
    %v987 = vmul.f32 %v958, 1.442695
    %v988 = vpow.pop %v987
    %v989 = vmul.f32 %v959, 1.442695
    %v990 = vpow.pop %v989
    %v991 = vmul.f32 %v960, 1.442695
    %v992 = vpow.pop %v991
    %v993 = vadd.f32 %v962, %v964
    %v994 = vadd.f32 %v993, %v966
    %v995 = vadd.f32 %v994, %v968
    %v996 = vadd.f32 %v995, %v970
    %v997 = vadd.f32 %v996, %v972
    %v998 = vadd.f32 %v997, %v974
    %v999 = vadd.f32 %v998, %v976
    %v1000 = vadd.f32 %v999, %v978
    %v1001 = vadd.f32 %v1000, %v980
    %v1002 = vadd.f32 %v1001, %v982
    %v1003 = vadd.f32 %v1002, %v984
    %v1004 = vadd.f32 %v1003, %v986
    %v1005 = vadd.f32 %v1004, %v988
    %v1006 = vadd.f32 %v1005, %v990
    %v1007 = vadd.f32 %v1006, %v992
    %v1008 = vrot.slane %v1007, 4
    %v1009 = vadd.f32 %v1007, %v1008
    %v1010 = vrot.slane %v1009, 2
    %v1011 = vadd.f32 %v1009, %v1010
    %v1012 = vrot.slane %v1011, 1
    %v1013 = vadd.f32 %v1011, %v1012
    %s1014 = scalar_lea.vmem %s0, 16
    %v1015 = vld [vmem:[%s1014] sm:$0xf]
    %v1016 = vld [vmem:[%s1014 + $0x4] sm:$0xf]
    %v1017 = vpack.c.bf16 %v964, %v962
    %v1018 = vpack.c.bf16 %v968, %v966
    %v1019 = vpack.c.bf16 %v972, %v970
    %v1020 = vpack.c.bf16 %v976, %v974
    %v1021 = vpack.c.bf16 %v980, %v978
    %v1022 = vpack.c.bf16 %v984, %v982
    %v1023 = vpack.c.bf16 %v988, %v986
    %v1024 = vpack.c.bf16 %v992, %v990
    %v1027 = vunpack.c.l.b16 %v1015
    %v1028 = vunpack.c.l.b16 %v1016
    %v1029 = vpack.c.b16 %v1028, %v1027
    %1031 = vmatpush.bf16.msra.mxu0 %v1024
    %1032 = vmatpush.bf16.msra.mxu0 %v1023
    %1033 = vmatpush.bf16.msra.mxu0 %v1022
    %1034 = vmatpush.bf16.msra.mxu0 %v1021
    %1035 = vmatpush.bf16.msra.mxu0 %v1020
    %1036 = vmatpush.bf16.msra.mxu0 %v1019
    %1037 = vmatpush.bf16.msra.mxu0 %v1018
    %1038 = vmatpush.bf16.msra.mxu0 %v1017
    %1039 = vmatmul.bf16.gmra.mxu0 %v1029
    %v1040 = vpop.f32.mrf.mxu0
    %v1041 = vadd.f32 0.0, %v1040
    %v1042 = vpop.f32.mrf.mxu0
    %v1043 = vadd.f32 0.0, %v1042
    %1044 = vdwg.mxu0
    %v1045 = vrcp.pop %v1013
    %v1046 = vmul.f32 %v1041, %v1045
    %v1047 = vmul.f32 %v1043, %v1045
    %v1048 = vld [vmem:[%s3 + $0x20] sm:$0xff]
    %v1049 = vld [vmem:[%s3 + $0x28] sm:$0xff]
    %1051 = vset.pattern.permute.xlu0 0
    %1052 = vperm.xlu0 %1051, %v1048
    %v1053 = vpop.permute.xlu0 %1052
    %1056 = vset.pattern.permute.xlu0 0
    %1057 = vperm.xlu0 %1056, %v1049
    %v1058 = vpop.permute.xlu0 %1057
    %v1060 = vadd.f32 %v1046, %v1053
    %v1061 = vadd.f32 %v1047, %v1058
    %vm1062 = vcmp.gt.f32.partialorder %v1060, 0.0
    %vm1063 = vcmp.gt.f32.partialorder %v1061, 0.0
    %v1064 = vmin.f32 %v1060, 0.0
    %v1065 = vmin.f32 %v1061, 0.0
    %v1066 = vmul.f32 %v1064, 1.442695
    %v1067 = vpow.pop %v1066
    %v1068 = vmul.f32 %v1065, 1.442695
    %v1069 = vpow.pop %v1068
    %v1070 = vsub.f32 %v1067, 1.0
    %v1071 = vsub.f32 %v1069, 1.0
    %v1072 = vsel %vm1062, %v1060, %v1070
    %v1073 = vsel %vm1063, %v1061, %v1071
    %1074 = vst [vmem:[#allocation2 + $0x20] sm:$0xff] %v1072
    %1075 = vst [vmem:[#allocation2 + $0x28] sm:$0xff] %v1073
    %v1076 = vld [vmem:[%s1] sm:$0xff]
    %v1077 = vld [vmem:[%s1 + $0x8] sm:$0xff]
    %v1078 = vld [vmem:[%s1 + $0x10] sm:$0xff]
    %v1079 = vld [vmem:[%s1 + $0x18] sm:$0xff]
    %v1080 = vld [vmem:[%s1 + $0x20] sm:$0xff]
    %v1081 = vld [vmem:[%s1 + $0x28] sm:$0xff]
    %v1082 = vld [vmem:[%s1 + $0x30] sm:$0xff]
    %v1083 = vld [vmem:[%s1 + $0x38] sm:$0xff]
    %v1084 = vld [vmem:[%s1 + $0x40] sm:$0xff]
    %v1085 = vld [vmem:[%s1 + $0x48] sm:$0xff]
    %v1086 = vld [vmem:[%s1 + $0x50] sm:$0xff]
    %v1087 = vld [vmem:[%s1 + $0x58] sm:$0xff]
    %v1088 = vld [vmem:[%s1 + $0x60] sm:$0xff]
    %v1089 = vld [vmem:[%s1 + $0x68] sm:$0xff]
    %v1090 = vld [vmem:[%s1 + $0x70] sm:$0xff]
    %v1091 = vld [vmem:[%s1 + $0x78] sm:$0xff]
    %1093 = vset.pattern.permute.xlu0 3
    %1094 = vperm.xlu0 %1093, %v1076
    %v1095 = vpop.permute.xlu0 %1094
    %1098 = vset.pattern.permute.xlu0 3
    %1099 = vperm.xlu0 %1098, %v1077
    %v1100 = vpop.permute.xlu0 %1099
    %1103 = vset.pattern.permute.xlu0 3
    %1104 = vperm.xlu0 %1103, %v1078
    %v1105 = vpop.permute.xlu0 %1104
    %1108 = vset.pattern.permute.xlu0 3
    %1109 = vperm.xlu0 %1108, %v1079
    %v1110 = vpop.permute.xlu0 %1109
    %1113 = vset.pattern.permute.xlu0 3
    %1114 = vperm.xlu0 %1113, %v1080
    %v1115 = vpop.permute.xlu0 %1114
    %1118 = vset.pattern.permute.xlu0 3
    %1119 = vperm.xlu0 %1118, %v1081
    %v1120 = vpop.permute.xlu0 %1119
    %1123 = vset.pattern.permute.xlu0 3
    %1124 = vperm.xlu0 %1123, %v1082
    %v1125 = vpop.permute.xlu0 %1124
    %1128 = vset.pattern.permute.xlu0 3
    %1129 = vperm.xlu0 %1128, %v1083
    %v1130 = vpop.permute.xlu0 %1129
    %1133 = vset.pattern.permute.xlu0 3
    %1134 = vperm.xlu0 %1133, %v1084
    %v1135 = vpop.permute.xlu0 %1134
    %1138 = vset.pattern.permute.xlu0 3
    %1139 = vperm.xlu0 %1138, %v1085
    %v1140 = vpop.permute.xlu0 %1139
    %1143 = vset.pattern.permute.xlu0 3
    %1144 = vperm.xlu0 %1143, %v1086
    %v1145 = vpop.permute.xlu0 %1144
    %1148 = vset.pattern.permute.xlu0 3
    %1149 = vperm.xlu0 %1148, %v1087
    %v1150 = vpop.permute.xlu0 %1149
    %1153 = vset.pattern.permute.xlu0 3
    %1154 = vperm.xlu0 %1153, %v1088
    %v1155 = vpop.permute.xlu0 %1154
    %1158 = vset.pattern.permute.xlu0 3
    %1159 = vperm.xlu0 %1158, %v1089
    %v1160 = vpop.permute.xlu0 %1159
    %1163 = vset.pattern.permute.xlu0 3
    %1164 = vperm.xlu0 %1163, %v1090
    %v1165 = vpop.permute.xlu0 %1164
    %1168 = vset.pattern.permute.xlu0 3
    %1169 = vperm.xlu0 %1168, %v1091
    %v1170 = vpop.permute.xlu0 %1169
    %v1172 = vperm.slane %v89, 3
    %v1173 = vadd.f32 %v1095, %v1172
    %v1174 = vadd.f32 %v1100, %v1172
    %v1175 = vadd.f32 %v1105, %v1172
    %v1176 = vadd.f32 %v1110, %v1172
    %v1177 = vadd.f32 %v1115, %v1172
    %v1178 = vadd.f32 %v1120, %v1172
    %v1179 = vadd.f32 %v1125, %v1172
    %v1180 = vadd.f32 %v1130, %v1172
    %v1181 = vadd.f32 %v1135, %v1172
    %v1182 = vadd.f32 %v1140, %v1172
    %v1183 = vadd.f32 %v1145, %v1172
    %v1184 = vadd.f32 %v1150, %v1172
    %v1185 = vadd.f32 %v1155, %v1172
    %v1186 = vadd.f32 %v1160, %v1172
    %v1187 = vadd.f32 %v1165, %v1172
    %v1188 = vadd.f32 %v1170, %v1172
    %vm1189 = vcmp.gt.f32.partialorder %v1173, 0.0
    %vm1190 = vcmp.gt.f32.partialorder %v1174, 0.0
    %vm1191 = vcmp.gt.f32.partialorder %v1175, 0.0
    %vm1192 = vcmp.gt.f32.partialorder %v1176, 0.0
    %vm1193 = vcmp.gt.f32.partialorder %v1177, 0.0
    %vm1194 = vcmp.gt.f32.partialorder %v1178, 0.0
    %vm1195 = vcmp.gt.f32.partialorder %v1179, 0.0
    %vm1196 = vcmp.gt.f32.partialorder %v1180, 0.0
    %vm1197 = vcmp.gt.f32.partialorder %v1181, 0.0
    %vm1198 = vcmp.gt.f32.partialorder %v1182, 0.0
    %vm1199 = vcmp.gt.f32.partialorder %v1183, 0.0
    %vm1200 = vcmp.gt.f32.partialorder %v1184, 0.0
    %vm1201 = vcmp.gt.f32.partialorder %v1185, 0.0
    %vm1202 = vcmp.gt.f32.partialorder %v1186, 0.0
    %vm1203 = vcmp.gt.f32.partialorder %v1187, 0.0
    %vm1204 = vcmp.gt.f32.partialorder %v1188, 0.0
    %v1205 = vmul.f32 %v1173, 0.2
    %v1206 = vmul.f32 %v1174, 0.2
    %v1207 = vmul.f32 %v1175, 0.2
    %v1208 = vmul.f32 %v1176, 0.2
    %v1209 = vmul.f32 %v1177, 0.2
    %v1210 = vmul.f32 %v1178, 0.2
    %v1211 = vmul.f32 %v1179, 0.2
    %v1212 = vmul.f32 %v1180, 0.2
    %v1213 = vmul.f32 %v1181, 0.2
    %v1214 = vmul.f32 %v1182, 0.2
    %v1215 = vmul.f32 %v1183, 0.2
    %v1216 = vmul.f32 %v1184, 0.2
    %v1217 = vmul.f32 %v1185, 0.2
    %v1218 = vmul.f32 %v1186, 0.2
    %v1219 = vmul.f32 %v1187, 0.2
    %v1220 = vmul.f32 %v1188, 0.2
    %v1221 = vsel %vm1189, %v1173, %v1205
    %v1222 = vsel %vm1190, %v1174, %v1206
    %v1223 = vsel %vm1191, %v1175, %v1207
    %v1224 = vsel %vm1192, %v1176, %v1208
    %v1225 = vsel %vm1193, %v1177, %v1209
    %v1226 = vsel %vm1194, %v1178, %v1210
    %v1227 = vsel %vm1195, %v1179, %v1211
    %v1228 = vsel %vm1196, %v1180, %v1212
    %v1229 = vsel %vm1197, %v1181, %v1213
    %v1230 = vsel %vm1198, %v1182, %v1214
    %v1231 = vsel %vm1199, %v1183, %v1215
    %v1232 = vsel %vm1200, %v1184, %v1216
    %v1233 = vsel %vm1201, %v1185, %v1217
    %v1234 = vsel %vm1202, %v1186, %v1218
    %v1235 = vsel %vm1203, %v1187, %v1219
    %v1236 = vsel %vm1204, %v1188, %v1220
    %v1237 = vadd.f32 %v1221, %v73
    %v1238 = vadd.f32 %v1222, %v74
    %v1239 = vadd.f32 %v1223, %v75
    %v1240 = vadd.f32 %v1224, %v76
    %v1241 = vadd.f32 %v1225, %v77
    %v1242 = vadd.f32 %v1226, %v78
    %v1243 = vadd.f32 %v1227, %v79
    %v1244 = vadd.f32 %v1228, %v80
    %v1245 = vadd.f32 %v1229, %v81
    %v1246 = vadd.f32 %v1230, %v82
    %v1247 = vadd.f32 %v1231, %v83
    %v1248 = vadd.f32 %v1232, %v84
    %v1249 = vadd.f32 %v1233, %v85
    %v1250 = vadd.f32 %v1234, %v86
    %v1251 = vadd.f32 %v1235, %v87
    %v1252 = vadd.f32 %v1236, %v88
    %v1253 = vmax.f32 %v1237, %v1241
    %v1254 = vmax.f32 %v1238, %v1242
    %v1255 = vmax.f32 %v1239, %v1243
    %v1256 = vmax.f32 %v1240, %v1244
    %v1257 = vmax.f32 %v1253, %v1245
    %v1258 = vmax.f32 %v1254, %v1246
    %v1259 = vmax.f32 %v1255, %v1247
    %v1260 = vmax.f32 %v1256, %v1248
    %v1261 = vmax.f32 %v1257, %v1249
    %v1262 = vmax.f32 %v1258, %v1250
    %v1263 = vmax.f32 %v1259, %v1251
    %v1264 = vmax.f32 %v1260, %v1252
    %v1265 = vmax.f32 %v1261, %v1262
    %v1266 = vmax.f32 %v1263, %v1264
    %v1267 = vmax.f32 %v1265, %v1266
    %v1268 = vrot.slane %v1267, 4
    %v1269 = vmax.f32 %v1267, %v1268
    %v1270 = vrot.slane %v1269, 2
    %v1271 = vmax.f32 %v1269, %v1270
    %v1272 = vrot.slane %v1271, 1
    %v1273 = vmax.f32 %v1271, %v1272
    %v1274 = vsub.f32 %v1237, %v1273
    %v1275 = vsub.f32 %v1238, %v1273
    %v1276 = vsub.f32 %v1239, %v1273
    %v1277 = vsub.f32 %v1240, %v1273
    %v1278 = vsub.f32 %v1241, %v1273
    %v1279 = vsub.f32 %v1242, %v1273
    %v1280 = vsub.f32 %v1243, %v1273
    %v1281 = vsub.f32 %v1244, %v1273
    %v1282 = vsub.f32 %v1245, %v1273
    %v1283 = vsub.f32 %v1246, %v1273
    %v1284 = vsub.f32 %v1247, %v1273
    %v1285 = vsub.f32 %v1248, %v1273
    %v1286 = vsub.f32 %v1249, %v1273
    %v1287 = vsub.f32 %v1250, %v1273
    %v1288 = vsub.f32 %v1251, %v1273
    %v1289 = vsub.f32 %v1252, %v1273
    %v1290 = vmul.f32 %v1274, 1.442695
    %v1291 = vpow.pop %v1290
    %v1292 = vmul.f32 %v1275, 1.442695
    %v1293 = vpow.pop %v1292
    %v1294 = vmul.f32 %v1276, 1.442695
    %v1295 = vpow.pop %v1294
    %v1296 = vmul.f32 %v1277, 1.442695
    %v1297 = vpow.pop %v1296
    %v1298 = vmul.f32 %v1278, 1.442695
    %v1299 = vpow.pop %v1298
    %v1300 = vmul.f32 %v1279, 1.442695
    %v1301 = vpow.pop %v1300
    %v1302 = vmul.f32 %v1280, 1.442695
    %v1303 = vpow.pop %v1302
    %v1304 = vmul.f32 %v1281, 1.442695
    %v1305 = vpow.pop %v1304
    %v1306 = vmul.f32 %v1282, 1.442695
    %v1307 = vpow.pop %v1306
    %v1308 = vmul.f32 %v1283, 1.442695
    %v1309 = vpow.pop %v1308
    %v1310 = vmul.f32 %v1284, 1.442695
    %v1311 = vpow.pop %v1310
    %v1312 = vmul.f32 %v1285, 1.442695
    %v1313 = vpow.pop %v1312
    %v1314 = vmul.f32 %v1286, 1.442695
    %v1315 = vpow.pop %v1314
    %v1316 = vmul.f32 %v1287, 1.442695
    %v1317 = vpow.pop %v1316
    %v1318 = vmul.f32 %v1288, 1.442695
    %v1319 = vpow.pop %v1318
    %v1320 = vmul.f32 %v1289, 1.442695
    %v1321 = vpow.pop %v1320
    %v1322 = vadd.f32 %v1291, %v1293
    %v1323 = vadd.f32 %v1322, %v1295
    %v1324 = vadd.f32 %v1323, %v1297
    %v1325 = vadd.f32 %v1324, %v1299
    %v1326 = vadd.f32 %v1325, %v1301
    %v1327 = vadd.f32 %v1326, %v1303
    %v1328 = vadd.f32 %v1327, %v1305
    %v1329 = vadd.f32 %v1328, %v1307
    %v1330 = vadd.f32 %v1329, %v1309
    %v1331 = vadd.f32 %v1330, %v1311
    %v1332 = vadd.f32 %v1331, %v1313
    %v1333 = vadd.f32 %v1332, %v1315
    %v1334 = vadd.f32 %v1333, %v1317
    %v1335 = vadd.f32 %v1334, %v1319
    %v1336 = vadd.f32 %v1335, %v1321
    %v1337 = vrot.slane %v1336, 4
    %v1338 = vadd.f32 %v1336, %v1337
    %v1339 = vrot.slane %v1338, 2
    %v1340 = vadd.f32 %v1338, %v1339
    %v1341 = vrot.slane %v1340, 1
    %v1342 = vadd.f32 %v1340, %v1341
    %s1343 = scalar_lea.vmem %s0, 24
    %v1344 = vld [vmem:[%s1343] sm:$0xf]
    %v1345 = vld [vmem:[%s1343 + $0x4] sm:$0xf]
    %v1346 = vpack.c.bf16 %v1293, %v1291
    %v1347 = vpack.c.bf16 %v1297, %v1295
    %v1348 = vpack.c.bf16 %v1301, %v1299
    %v1349 = vpack.c.bf16 %v1305, %v1303
    %v1350 = vpack.c.bf16 %v1309, %v1307
    %v1351 = vpack.c.bf16 %v1313, %v1311
    %v1352 = vpack.c.bf16 %v1317, %v1315
    %v1353 = vpack.c.bf16 %v1321, %v1319
    %v1356 = vunpack.c.l.b16 %v1344
    %v1357 = vunpack.c.l.b16 %v1345
    %v1358 = vpack.c.b16 %v1357, %v1356
    %1360 = vmatpush.bf16.msra.mxu0 %v1353
    %1361 = vmatpush.bf16.msra.mxu0 %v1352
    %1362 = vmatpush.bf16.msra.mxu0 %v1351
    %1363 = vmatpush.bf16.msra.mxu0 %v1350
    %1364 = vmatpush.bf16.msra.mxu0 %v1349
    %1365 = vmatpush.bf16.msra.mxu0 %v1348
    %1366 = vmatpush.bf16.msra.mxu0 %v1347
    %1367 = vmatpush.bf16.msra.mxu0 %v1346
    %1368 = vmatmul.bf16.gmra.mxu0 %v1358
    %v1369 = vpop.f32.mrf.mxu0
    %v1370 = vadd.f32 0.0, %v1369
    %v1371 = vpop.f32.mrf.mxu0
    %v1372 = vadd.f32 0.0, %v1371
    %1373 = vdwg.mxu0
    %v1374 = vrcp.pop %v1342
    %v1375 = vmul.f32 %v1370, %v1374
    %v1376 = vmul.f32 %v1372, %v1374
    %v1377 = vld [vmem:[%s3 + $0x30] sm:$0xff]
    %v1378 = vld [vmem:[%s3 + $0x38] sm:$0xff]
    %1380 = vset.pattern.permute.xlu0 0
    %1381 = vperm.xlu0 %1380, %v1377
    %v1382 = vpop.permute.xlu0 %1381
    %1385 = vset.pattern.permute.xlu0 0
    %1386 = vperm.xlu0 %1385, %v1378
    %v1387 = vpop.permute.xlu0 %1386
    %v1389 = vadd.f32 %v1375, %v1382
    %v1390 = vadd.f32 %v1376, %v1387
    %vm1391 = vcmp.gt.f32.partialorder %v1389, 0.0
    %vm1392 = vcmp.gt.f32.partialorder %v1390, 0.0
    %v1393 = vmin.f32 %v1389, 0.0
    %v1394 = vmin.f32 %v1390, 0.0
    %v1395 = vmul.f32 %v1393, 1.442695
    %v1396 = vpow.pop %v1395
    %v1397 = vmul.f32 %v1394, 1.442695
    %v1398 = vpow.pop %v1397
    %v1399 = vsub.f32 %v1396, 1.0
    %v1400 = vsub.f32 %v1398, 1.0
    %v1401 = vsel %vm1391, %v1389, %v1399
    %v1402 = vsel %vm1392, %v1390, %v1400
    %1403 = vst [vmem:[#allocation2 + $0x30] sm:$0xff] %v1401
    %1404 = vst [vmem:[#allocation2 + $0x38] sm:$0xff] %v1402
    // Predicated region
    $region22: #{tpu_custom_call.1} parent=1 // pred_check
      _
    $region23: #{tpu_custom_call.1} parent=1 // pred_check_branch
      %1406 = sbr.rel (0) target = $region25
    $region24: #{tpu_custom_call.1} parent=1 // pred_region
      %1408 = vsyncadd [#allocation3], 0
      %s1409 = sshll.u32 [#allocation2], 4
      %s1410 = int_to_ptr.vmem [resolvable:$true] %s1409
      %s1411 = sshll.u32 %s5, 4
      %s1412 = int_to_ptr.hbm [resolvable:$true] %s1411
      %1417 = dma.vmem_to_hbm [thread:$0]  %s1410, 1024, %s1412, [#allocation3], 128, 128, 8
    $region25: #{tpu_custom_call.1} parent=1 // pred_fallthru
      _
    // Predicated region
    $region26: #{tpu_custom_call.1} parent=1 // pred_check
      _
    $region27: #{tpu_custom_call.1} parent=1 // pred_check_branch
      %1419 = sbr.rel (0) target = $region29
    $region28: #{tpu_custom_call.1} parent=1 // pred_region
      %1421 = dma.done [#allocation3], 1024
    $region29: #{tpu_custom_call.1} parent=1 // pred_fallthru
      _
    %1422 = vsyncpa [#allocation3], 1

</llo_original>
